<compile_context>
chip_gen: v6e
topology: v6e:2x2x1
jax: 0.10.0
libtpu: 0.0.40
codegen_flags: <defaults>
</compile_context>

<pallas_src>
import jax
import jax.numpy as jnp
from jax.experimental import pallas as pl
from jax.experimental.pallas import tpu as pltpu

# Small shapes consistent with the module (hidden_size=20, 3 layers, out=1).
T, B, I, H, O = 8, 2, 16, 20, 1
NUM_LAYERS = 3
H2, H3, H4 = 2 * H, 3 * H, 4 * H
NW = H4                                   # packed slab width (80 lanes)


def _align16(n):
    return (n + 15) // 16 * 16


# Row offsets of sub-blocks inside the bf16 weight slab (16-row aligned so every
# static slice starts on a bf16 sublane-tile boundary).
R_WIH0 = 0
R_WHH0 = R_WIH0 + _align16(I)             # 16
R_W1 = R_WHH0 + _align16(H)               # 48
R_W2 = R_W1 + _align16(H2)                # 96
R_WLIN = R_W2 + _align16(H2)              # 144
R_TOTAL = R_WLIN + _align16(H)            # 176


def _make_kernel(Tn, Bn, In, Hn, On):
    Hn2, Hn3, Hn4 = 2 * Hn, 3 * Hn, 4 * Hn
    bf16, f32 = jnp.bfloat16, jnp.float32

    def cell0(gi, gh, h_prev):
        # gi already holds bih + bhh_{r,z}; gh holds bhh_n on its n slice.
        rz = jax.nn.sigmoid(gi[:, :Hn2] + gh[:, :Hn2])
        r, z = rz[:, :Hn], rz[:, Hn:]
        n = jnp.tanh(gi[:, Hn2:] + r * gh[:, Hn2:])
        return (1.0 - z) * n + z * h_prev

    def fused_cell(h_in, h_prev, w, b):
        # One MXU push: [h_in | h_prev] @ [[Wih_rz, Wih_n, 0], [Whh_rz, 0, Whh_n]]
        hcat = jnp.concatenate([h_in, h_prev], axis=-1).astype(bf16)   # (B, 2H)
        g = jnp.dot(hcat, w, preferred_element_type=f32) + b           # (B, 4H)
        rz = jax.nn.sigmoid(g[:, :Hn2])
        r, z = rz[:, :Hn], rz[:, Hn:]
        n = jnp.tanh(g[:, Hn2:Hn3] + r * g[:, Hn3:])
        return (1.0 - z) * n + z * h_prev

    def kernel(x_ref, w_ref, b_ref, out_ref):
        # ---- hoisted weight / bias loads (bf16 weights, f32 biases) ----
        wih0 = w_ref[R_WIH0:R_WIH0 + In, :Hn3]            # (I, 3H)
        whh0 = w_ref[R_WHH0:R_WHH0 + Hn, :Hn3]            # (H, 3H)
        w1 = w_ref[R_W1:R_W1 + Hn2, :]                    # (2H, 4H)
        w2 = w_ref[R_W2:R_W2 + Hn2, :]                    # (2H, 4H)
        wlin = w_ref[R_WLIN:R_WLIN + Hn, :On]             # (H, O)

        b0_in = b_ref[0:1, :Hn3]
        b0_h = jnp.broadcast_to(b_ref[1:2, :Hn3], (Bn, Hn3))
        b1 = jnp.broadcast_to(b_ref[2:3, :], (Bn, Hn4))
        b2 = jnp.broadcast_to(b_ref[3:4, :], (Bn, Hn4))
        b_lin = b_ref[4:5, :On]

        # ---- hoisted layer-0 input projection for ALL timesteps (1 MXU op) ----
        gi0_all = jnp.dot(x_ref[...].astype(bf16), wih0,
                          preferred_element_type=f32) + b0_in        # (T*B, 3H)

        # PyTorch default h0 = 0 for every layer.
        h0 = jnp.zeros((Bn, Hn), f32)
        h1 = jnp.zeros((Bn, Hn), f32)
        h2 = jnp.zeros((Bn, Hn), f32)
        h2_steps = []

        # ---- diagonal wavefront over T+2 fully-unrolled stages ----
        # At stage s: layer 0 processes t=s, layer 1 t=s-1, layer 2 t=s-2, all
        # reading the hidden states carried in from the previous stage, so their
        # dots / transcendentals are mutually independent within a stage.
        for s in range(Tn + 2):
            nh0, nh1, nh2 = h0, h1, h2
            if s < Tn:                                     # layer 0 @ t = s
                gi0 = gi0_all[s * Bn:(s + 1) * Bn, :]
                gh0 = jnp.dot(h0.astype(bf16), whh0,
                              preferred_element_type=f32) + b0_h
                nh0 = cell0(gi0, gh0, h0)
            if 0 <= s - 1 < Tn:                            # layer 1 @ t = s-1
                nh1 = fused_cell(h0, h1, w1, b1)           # h0 is h0(s-1)
            if 0 <= s - 2 < Tn:                            # layer 2 @ t = s-2
                nh2 = fused_cell(h1, h2, w2, b2)           # h1 is h1(s-2)
                h2_steps.append(nh2)
            h0, h1, h2 = nh0, nh1, nh2

        # ---- hoisted final Linear: one MXU op + one store for the sequence ----
        h2_seq = jnp.concatenate(h2_steps, axis=0).astype(bf16)      # (T*B, H)
        y = jnp.dot(h2_seq, wlin, preferred_element_type=f32) + b_lin
        out_ref[...] = y.astype(out_ref.dtype)

    return kernel


def _pack_params(params):
    """Pack all weights into one bf16 slab and all biases into one f32 slab.

    Weight slab rows (width NW = 4H):
      [R_WIH0:+I ]  Wih0 (I, 3H)  fused [r|z|n] columns
      [R_WHH0:+H ]  Whh0 (H, 3H)
      [R_W1  :+2H]  W1   (2H, 4H) = [[Wih_rz, Wih_n, 0], [Whh_rz, 0, Whh_n]]
      [R_W2  :+2H]  W2   (2H, 4H)
      [R_WLIN:+H ]  Wlin (H, O)
    Bias slab rows (f32, (8, 4H)):
      0: bih0 + [bhh0_r | bhh0_z | 0]                (3H)
      1: [0 | 0 | bhh0_n]                            (3H)
      2: [bih1_rz + bhh1_rz | bih1_n | bhh1_n]       (4H)
      3: same for layer 2                            (4H)
      4: b_lin                                       (O)
    """
    wslab = jnp.zeros((R_TOTAL, NW), jnp.float32)
    bslab = jnp.zeros((8, NW), jnp.float32)

    wih0, whh0, bih0, bhh0 = params["layers"][0]
    wslab = wslab.at[R_WIH0:R_WIH0 + I, :H3].set(
        jnp.concatenate([wih0[0], wih0[1], wih0[2]], axis=1))
    wslab = wslab.at[R_WHH0:R_WHH0 + H, :H3].set(
        jnp.concatenate([whh0[0], whh0[1], whh0[2]], axis=1))
    bslab = bslab.at[0, :H3].set(
        jnp.concatenate([bih0[0] + bhh0[0], bih0[1] + bhh0[1], bih0[2]],
                        axis=1)[0])
    bslab = bslab.at[1, H2:H3].set(bhh0[2][0])

    for l, r0, brow in ((1, R_W1, 2), (2, R_W2, 3)):
        wih, whh, bih, bhh = params["layers"][l]
        wl = jnp.zeros((H2, H4), jnp.float32)
        wl = wl.at[:H, 0:H].set(wih[0])
        wl = wl.at[:H, H:H2].set(wih[1])
        wl = wl.at[:H, H2:H3].set(wih[2])
        wl = wl.at[H:, 0:H].set(whh[0])
        wl = wl.at[H:, H:H2].set(whh[1])
        wl = wl.at[H:, H3:H4].set(whh[2])
        wslab = wslab.at[r0:r0 + H2, :].set(wl)
        bslab = bslab.at[brow, :].set(
            jnp.concatenate([bih[0] + bhh[0], bih[1] + bhh[1], bih[2], bhh[2]],
                            axis=1)[0])

    wslab = wslab.at[R_WLIN:R_WLIN + H, :O].set(params["w_lin"])
    bslab = bslab.at[4, :O].set(params["b_lin"][0])
    return wslab.astype(jnp.bfloat16), bslab


@jax.jit
def gru_forward(x, params):
    Tn, Bn, In = x.shape
    wslab, bslab = _pack_params(params)
    vmem = pltpu.MemorySpace.VMEM
    out = pl.pallas_call(
        _make_kernel(Tn, Bn, In, H, O),
        out_shape=jax.ShapeDtypeStruct((Tn * Bn, O), jnp.float32),
        in_specs=[pl.BlockSpec(memory_space=vmem)] * 3,
        out_specs=pl.BlockSpec(memory_space=vmem),
    )(x.reshape(Tn * Bn, In), wslab, bslab)
    return out.reshape(Tn, Bn, O)


def init_params(key):
    """Deterministic init matching PyTorch's U(-1/sqrt(H), 1/sqrt(H))."""
    k = 1.0 / float(jnp.sqrt(jnp.float32(H)))
    keys = jax.random.split(key, NUM_LAYERS * 4 + 2)
    layers, ki = [], 0
    for l in range(NUM_LAYERS):
        in_dim = I if l == 0 else H
        wih = jax.random.uniform(keys[ki], (3, in_dim, H), jnp.float32, -k, k); ki += 1
        whh = jax.random.uniform(keys[ki], (3, H, H), jnp.float32, -k, k); ki += 1
        bih = jax.random.uniform(keys[ki], (3, 1, H), jnp.float32, -k, k); ki += 1
        bhh = jax.random.uniform(keys[ki], (3, 1, H), jnp.float32, -k, k); ki += 1
        layers.append((wih, whh, bih, bhh))
    w_lin = jax.random.uniform(keys[ki], (H, O), jnp.float32, -k, k); ki += 1
    b_lin = jax.random.uniform(keys[ki], (1, O), jnp.float32, -k, k); ki += 1
    return {"layers": layers, "w_lin": w_lin, "b_lin": b_lin}


def gru_forward_ref(x, params):
    """Pure-JAX f32 reference (same semantics as PyTorch nn.GRU + nn.Linear)."""
    def cell(x_t, h_prev, wih, whh, bih, bhh):
        r = jax.nn.sigmoid(x_t @ wih[0] + bih[0] + h_prev @ whh[0] + bhh[0])
        z = jax.nn.sigmoid(x_t @ wih[1] + bih[1] + h_prev @ whh[1] + bhh[1])
        n = jnp.tanh(x_t @ wih[2] + bih[2] + r * (h_prev @ whh[2] + bhh[2]))
        return (1.0 - z) * n + z * h_prev

    Tn, Bn, _ = x.shape
    hs = [jnp.zeros((Bn, H), jnp.float32) for _ in range(NUM_LAYERS)]
    outs = []
    for t in range(Tn):
        inp = x[t]
        for l in range(NUM_LAYERS):
            wih, whh, bih, bhh = params["layers"][l]
            hs[l] = cell(inp, hs[l], wih, whh, bih, bhh)
            inp = hs[l]
        outs.append(inp @ params["w_lin"] + params["b_lin"])
    return jnp.stack(outs, axis=0)


if __name__ == "__main__":
    key = jax.random.PRNGKey(0)
    kx, kp = jax.random.split(key)
    x = jax.random.normal(kx, (T, B, I), jnp.float32)
    params = init_params(kp)

    out = gru_forward(x, params)
    out = jax.block_until_ready(out)

    ref = gru_forward_ref(x, params)
    assert out.shape == (T, B, O)
    # Tolerance loosened vs. the pure-f32 reference because the kernel feeds the
    # MXU bf16 operands (f32 accumulation), per the performance review.
    assert jnp.allclose(out, ref, atol=3e-2, rtol=3e-2), (
        float(jnp.max(jnp.abs(out - ref))))
    print("KERNEL_OK")
</pallas_src>

<mosaic_0001>
module attributes {stable_mosaic.version = 11 : i64} {
  func.func @kernel(%arg0: memref<16x16xf32, #tpu.memory_space<vmem>>, %arg1: memref<176x80xbf16, #tpu.memory_space<vmem>>, %arg2: memref<8x80xf32, #tpu.memory_space<vmem>>, %arg3: memref<16x1xf32, #tpu.memory_space<vmem>>) attributes {dimension_semantics = [], scalar_prefetch = 0 : i64, scratch_operands = 0 : i64, tpu.core_type = #tpu.core_type<tc>} {
    %c0 = arith.constant 0 : index
    %c0_0 = arith.constant 0 : index
    %0 = vector.load %arg1[%c0, %c0_0] : memref<176x80xbf16, #tpu.memory_space<vmem>>, vector<16x60xbf16>
    %c16 = arith.constant 16 : index
    %c0_1 = arith.constant 0 : index
    %1 = vector.load %arg1[%c16, %c0_1] : memref<176x80xbf16, #tpu.memory_space<vmem>>, vector<20x60xbf16>
    %c48 = arith.constant 48 : index
    %c0_2 = arith.constant 0 : index
    %2 = vector.load %arg1[%c48, %c0_2] : memref<176x80xbf16, #tpu.memory_space<vmem>>, vector<40x80xbf16>
    %c96 = arith.constant 96 : index
    %c0_3 = arith.constant 0 : index
    %3 = vector.load %arg1[%c96, %c0_3] : memref<176x80xbf16, #tpu.memory_space<vmem>>, vector<40x80xbf16>
    %c144 = arith.constant 144 : index
    %c0_4 = arith.constant 0 : index
    %4 = vector.load %arg1[%c144, %c0_4] : memref<176x80xbf16, #tpu.memory_space<vmem>>, vector<20x1xbf16>
    %c0_5 = arith.constant 0 : index
    %c0_6 = arith.constant 0 : index
    %5 = vector.load %arg2[%c0_5, %c0_6] : memref<8x80xf32, #tpu.memory_space<vmem>>, vector<1x60xf32>
    %c1 = arith.constant 1 : index
    %c0_7 = arith.constant 0 : index
    %6 = vector.load %arg2[%c1, %c0_7] : memref<8x80xf32, #tpu.memory_space<vmem>>, vector<1x60xf32>
    %7 = vector.shape_cast %6 : vector<1x60xf32> to vector<1x60xf32>
    %8 = vector.broadcast %7 : vector<1x60xf32> to vector<2x60xf32>
    %c2 = arith.constant 2 : index
    %c0_8 = arith.constant 0 : index
    %9 = vector.load %arg2[%c2, %c0_8] : memref<8x80xf32, #tpu.memory_space<vmem>>, vector<1x80xf32>
    %10 = vector.shape_cast %9 : vector<1x80xf32> to vector<1x80xf32>
    %11 = vector.broadcast %10 : vector<1x80xf32> to vector<2x80xf32>
    %c3 = arith.constant 3 : index
    %c0_9 = arith.constant 0 : index
    %12 = vector.load %arg2[%c3, %c0_9] : memref<8x80xf32, #tpu.memory_space<vmem>>, vector<1x80xf32>
    %13 = vector.shape_cast %12 : vector<1x80xf32> to vector<1x80xf32>
    %14 = vector.broadcast %13 : vector<1x80xf32> to vector<2x80xf32>
    %c4 = arith.constant 4 : index
    %c0_10 = arith.constant 0 : index
    %15 = vector.load %arg2[%c4, %c0_10] : memref<8x80xf32, #tpu.memory_space<vmem>>, vector<1x1xf32>
    %c0_11 = arith.constant 0 : index
    %c0_12 = arith.constant 0 : index
    %16 = vector.load %arg0[%c0_11, %c0_12] : memref<16x16xf32, #tpu.memory_space<vmem>>, vector<16x16xf32>
    %17 = arith.truncf %16 : vector<16x16xf32> to vector<16x16xbf16>
    %cst = arith.constant dense<0.000000e+00> : vector<16x60xf32>
    %18 = tpu.matmul %17, %0, %cst {dimension_numbers = #tpu.dot_dimension_numbers<[1], [0], [0], [1], [0, 0, 1, 1], [], []>} : vector<16x16xbf16>, vector<16x60xbf16>, vector<16x60xf32> -> vector<16x60xf32>
    %19 = vector.broadcast %5 : vector<1x60xf32> to vector<16x60xf32>
    %20 = arith.addf %18, %19 : vector<16x60xf32>
    %cst_13 = arith.constant 0.000000e+00 : f32
    %21 = vector.broadcast %cst_13 : f32 to vector<2x20xf32>
    %cst_14 = arith.constant 0.000000e+00 : f32
    %22 = vector.broadcast %cst_14 : f32 to vector<2x20xf32>
    %cst_15 = arith.constant 0.000000e+00 : f32
    %23 = vector.broadcast %cst_15 : f32 to vector<2x20xf32>
    %24 = vector.extract_strided_slice %20 {offsets = [0, 0], sizes = [2, 60], strides = [1, 1]} : vector<16x60xf32> to vector<2x60xf32>
    %25 = arith.truncf %21 : vector<2x20xf32> to vector<2x20xbf16>
    %cst_16 = arith.constant dense<0.000000e+00> : vector<2x60xf32>
    %26 = tpu.matmul %25, %1, %cst_16 {dimension_numbers = #tpu.dot_dimension_numbers<[1], [0], [0], [1], [0, 0, 1, 1], [], []>} : vector<2x20xbf16>, vector<20x60xbf16>, vector<2x60xf32> -> vector<2x60xf32>
    %27 = arith.addf %26, %8 : vector<2x60xf32>
    %28 = vector.extract_strided_slice %24 {offsets = [0, 0], sizes = [2, 40], strides = [1, 1]} : vector<2x60xf32> to vector<2x40xf32>
    %29 = vector.extract_strided_slice %27 {offsets = [0, 0], sizes = [2, 40], strides = [1, 1]} : vector<2x60xf32> to vector<2x40xf32>
    %30 = arith.addf %28, %29 : vector<2x40xf32>
    %31 = arith.negf %30 : vector<2x40xf32>
    %32 = math.exp %31 : vector<2x40xf32>
    %cst_17 = arith.constant 1.000000e+00 : f32
    %33 = vector.broadcast %cst_17 : f32 to vector<2x40xf32>
    %34 = arith.addf %33, %32 : vector<2x40xf32>
    %35 = arith.divf %33, %34 : vector<2x40xf32>
    %36 = vector.extract_strided_slice %35 {offsets = [0, 0], sizes = [2, 20], strides = [1, 1]} : vector<2x40xf32> to vector<2x20xf32>
    %37 = vector.extract_strided_slice %35 {offsets = [0, 20], sizes = [2, 20], strides = [1, 1]} : vector<2x40xf32> to vector<2x20xf32>
    %38 = vector.extract_strided_slice %24 {offsets = [0, 40], sizes = [2, 20], strides = [1, 1]} : vector<2x60xf32> to vector<2x20xf32>
    %39 = vector.extract_strided_slice %27 {offsets = [0, 40], sizes = [2, 20], strides = [1, 1]} : vector<2x60xf32> to vector<2x20xf32>
    %40 = arith.mulf %36, %39 : vector<2x20xf32>
    %41 = arith.addf %38, %40 : vector<2x20xf32>
    %42 = math.tanh %41 : vector<2x20xf32>
    %cst_18 = arith.constant 1.000000e+00 : f32
    %43 = vector.broadcast %cst_18 : f32 to vector<2x20xf32>
    %44 = arith.subf %43, %37 : vector<2x20xf32>
    %45 = arith.mulf %44, %42 : vector<2x20xf32>
    %46 = arith.mulf %37, %21 : vector<2x20xf32>
    %47 = arith.addf %45, %46 : vector<2x20xf32>
    %48 = vector.extract_strided_slice %20 {offsets = [2, 0], sizes = [2, 60], strides = [1, 1]} : vector<16x60xf32> to vector<2x60xf32>
    %49 = arith.truncf %47 : vector<2x20xf32> to vector<2x20xbf16>
    %cst_19 = arith.constant dense<0.000000e+00> : vector<2x60xf32>
    %50 = tpu.matmul %49, %1, %cst_19 {dimension_numbers = #tpu.dot_dimension_numbers<[1], [0], [0], [1], [0, 0, 1, 1], [], []>} : vector<2x20xbf16>, vector<20x60xbf16>, vector<2x60xf32> -> vector<2x60xf32>
    %51 = arith.addf %50, %8 : vector<2x60xf32>
    %52 = vector.extract_strided_slice %48 {offsets = [0, 0], sizes = [2, 40], strides = [1, 1]} : vector<2x60xf32> to vector<2x40xf32>
    %53 = vector.extract_strided_slice %51 {offsets = [0, 0], sizes = [2, 40], strides = [1, 1]} : vector<2x60xf32> to vector<2x40xf32>
    %54 = arith.addf %52, %53 : vector<2x40xf32>
    %55 = arith.negf %54 : vector<2x40xf32>
    %56 = math.exp %55 : vector<2x40xf32>
    %cst_20 = arith.constant 1.000000e+00 : f32
    %57 = vector.broadcast %cst_20 : f32 to vector<2x40xf32>
    %58 = arith.addf %57, %56 : vector<2x40xf32>
    %59 = arith.divf %57, %58 : vector<2x40xf32>
    %60 = vector.extract_strided_slice %59 {offsets = [0, 0], sizes = [2, 20], strides = [1, 1]} : vector<2x40xf32> to vector<2x20xf32>
    %61 = vector.extract_strided_slice %59 {offsets = [0, 20], sizes = [2, 20], strides = [1, 1]} : vector<2x40xf32> to vector<2x20xf32>
    %62 = vector.extract_strided_slice %48 {offsets = [0, 40], sizes = [2, 20], strides = [1, 1]} : vector<2x60xf32> to vector<2x20xf32>
    %63 = vector.extract_strided_slice %51 {offsets = [0, 40], sizes = [2, 20], strides = [1, 1]} : vector<2x60xf32> to vector<2x20xf32>
    %64 = arith.mulf %60, %63 : vector<2x20xf32>
    %65 = arith.addf %62, %64 : vector<2x20xf32>
    %66 = math.tanh %65 : vector<2x20xf32>
    %cst_21 = arith.constant 1.000000e+00 : f32
    %67 = vector.broadcast %cst_21 : f32 to vector<2x20xf32>
    %68 = arith.subf %67, %61 : vector<2x20xf32>
    %69 = arith.mulf %68, %66 : vector<2x20xf32>
    %70 = arith.mulf %61, %47 : vector<2x20xf32>
    %71 = arith.addf %69, %70 : vector<2x20xf32>
    %72 = tpu.concatenate %47, %22 in 1 : vector<2x20xf32>, vector<2x20xf32> -> vector<2x40xf32>
    %73 = arith.truncf %72 : vector<2x40xf32> to vector<2x40xbf16>
    %cst_22 = arith.constant dense<0.000000e+00> : vector<2x80xf32>
    %74 = tpu.matmul %73, %2, %cst_22 {dimension_numbers = #tpu.dot_dimension_numbers<[1], [0], [0], [1], [0, 0, 1, 1], [], []>} : vector<2x40xbf16>, vector<40x80xbf16>, vector<2x80xf32> -> vector<2x80xf32>
    %75 = arith.addf %74, %11 : vector<2x80xf32>
    %76 = vector.extract_strided_slice %75 {offsets = [0, 0], sizes = [2, 40], strides = [1, 1]} : vector<2x80xf32> to vector<2x40xf32>
    %77 = arith.negf %76 : vector<2x40xf32>
    %78 = math.exp %77 : vector<2x40xf32>
    %cst_23 = arith.constant 1.000000e+00 : f32
    %79 = vector.broadcast %cst_23 : f32 to vector<2x40xf32>
    %80 = arith.addf %79, %78 : vector<2x40xf32>
    %81 = arith.divf %79, %80 : vector<2x40xf32>
    %82 = vector.extract_strided_slice %81 {offsets = [0, 0], sizes = [2, 20], strides = [1, 1]} : vector<2x40xf32> to vector<2x20xf32>
    %83 = vector.extract_strided_slice %81 {offsets = [0, 20], sizes = [2, 20], strides = [1, 1]} : vector<2x40xf32> to vector<2x20xf32>
    %84 = vector.extract_strided_slice %75 {offsets = [0, 40], sizes = [2, 20], strides = [1, 1]} : vector<2x80xf32> to vector<2x20xf32>
    %85 = vector.extract_strided_slice %75 {offsets = [0, 60], sizes = [2, 20], strides = [1, 1]} : vector<2x80xf32> to vector<2x20xf32>
    %86 = arith.mulf %82, %85 : vector<2x20xf32>
    %87 = arith.addf %84, %86 : vector<2x20xf32>
    %88 = math.tanh %87 : vector<2x20xf32>
    %cst_24 = arith.constant 1.000000e+00 : f32
    %89 = vector.broadcast %cst_24 : f32 to vector<2x20xf32>
    %90 = arith.subf %89, %83 : vector<2x20xf32>
    %91 = arith.mulf %90, %88 : vector<2x20xf32>
    %92 = arith.mulf %83, %22 : vector<2x20xf32>
    %93 = arith.addf %91, %92 : vector<2x20xf32>
    %94 = vector.extract_strided_slice %20 {offsets = [4, 0], sizes = [2, 60], strides = [1, 1]} : vector<16x60xf32> to vector<2x60xf32>
    %95 = arith.truncf %71 : vector<2x20xf32> to vector<2x20xbf16>
    %cst_25 = arith.constant dense<0.000000e+00> : vector<2x60xf32>
    %96 = tpu.matmul %95, %1, %cst_25 {dimension_numbers = #tpu.dot_dimension_numbers<[1], [0], [0], [1], [0, 0, 1, 1], [], []>} : vector<2x20xbf16>, vector<20x60xbf16>, vector<2x60xf32> -> vector<2x60xf32>
    %97 = arith.addf %96, %8 : vector<2x60xf32>
    %98 = vector.extract_strided_slice %94 {offsets = [0, 0], sizes = [2, 40], strides = [1, 1]} : vector<2x60xf32> to vector<2x40xf32>
    %99 = vector.extract_strided_slice %97 {offsets = [0, 0], sizes = [2, 40], strides = [1, 1]} : vector<2x60xf32> to vector<2x40xf32>
    %100 = arith.addf %98, %99 : vector<2x40xf32>
    %101 = arith.negf %100 : vector<2x40xf32>
    %102 = math.exp %101 : vector<2x40xf32>
    %cst_26 = arith.constant 1.000000e+00 : f32
    %103 = vector.broadcast %cst_26 : f32 to vector<2x40xf32>
    %104 = arith.addf %103, %102 : vector<2x40xf32>
    %105 = arith.divf %103, %104 : vector<2x40xf32>
    %106 = vector.extract_strided_slice %105 {offsets = [0, 0], sizes = [2, 20], strides = [1, 1]} : vector<2x40xf32> to vector<2x20xf32>
    %107 = vector.extract_strided_slice %105 {offsets = [0, 20], sizes = [2, 20], strides = [1, 1]} : vector<2x40xf32> to vector<2x20xf32>
    %108 = vector.extract_strided_slice %94 {offsets = [0, 40], sizes = [2, 20], strides = [1, 1]} : vector<2x60xf32> to vector<2x20xf32>
    %109 = vector.extract_strided_slice %97 {offsets = [0, 40], sizes = [2, 20], strides = [1, 1]} : vector<2x60xf32> to vector<2x20xf32>
    %110 = arith.mulf %106, %109 : vector<2x20xf32>
    %111 = arith.addf %108, %110 : vector<2x20xf32>
    %112 = math.tanh %111 : vector<2x20xf32>
    %cst_27 = arith.constant 1.000000e+00 : f32
    %113 = vector.broadcast %cst_27 : f32 to vector<2x20xf32>
    %114 = arith.subf %113, %107 : vector<2x20xf32>
    %115 = arith.mulf %114, %112 : vector<2x20xf32>
    %116 = arith.mulf %107, %71 : vector<2x20xf32>
    %117 = arith.addf %115, %116 : vector<2x20xf32>
    %118 = tpu.concatenate %71, %93 in 1 : vector<2x20xf32>, vector<2x20xf32> -> vector<2x40xf32>
    %119 = arith.truncf %118 : vector<2x40xf32> to vector<2x40xbf16>
    %cst_28 = arith.constant dense<0.000000e+00> : vector<2x80xf32>
    %120 = tpu.matmul %119, %2, %cst_28 {dimension_numbers = #tpu.dot_dimension_numbers<[1], [0], [0], [1], [0, 0, 1, 1], [], []>} : vector<2x40xbf16>, vector<40x80xbf16>, vector<2x80xf32> -> vector<2x80xf32>
    %121 = arith.addf %120, %11 : vector<2x80xf32>
    %122 = vector.extract_strided_slice %121 {offsets = [0, 0], sizes = [2, 40], strides = [1, 1]} : vector<2x80xf32> to vector<2x40xf32>
    %123 = arith.negf %122 : vector<2x40xf32>
    %124 = math.exp %123 : vector<2x40xf32>
    %cst_29 = arith.constant 1.000000e+00 : f32
    %125 = vector.broadcast %cst_29 : f32 to vector<2x40xf32>
    %126 = arith.addf %125, %124 : vector<2x40xf32>
    %127 = arith.divf %125, %126 : vector<2x40xf32>
    %128 = vector.extract_strided_slice %127 {offsets = [0, 0], sizes = [2, 20], strides = [1, 1]} : vector<2x40xf32> to vector<2x20xf32>
    %129 = vector.extract_strided_slice %127 {offsets = [0, 20], sizes = [2, 20], strides = [1, 1]} : vector<2x40xf32> to vector<2x20xf32>
    %130 = vector.extract_strided_slice %121 {offsets = [0, 40], sizes = [2, 20], strides = [1, 1]} : vector<2x80xf32> to vector<2x20xf32>
    %131 = vector.extract_strided_slice %121 {offsets = [0, 60], sizes = [2, 20], strides = [1, 1]} : vector<2x80xf32> to vector<2x20xf32>
    %132 = arith.mulf %128, %131 : vector<2x20xf32>
    %133 = arith.addf %130, %132 : vector<2x20xf32>
    %134 = math.tanh %133 : vector<2x20xf32>
    %cst_30 = arith.constant 1.000000e+00 : f32
    %135 = vector.broadcast %cst_30 : f32 to vector<2x20xf32>
    %136 = arith.subf %135, %129 : vector<2x20xf32>
    %137 = arith.mulf %136, %134 : vector<2x20xf32>
    %138 = arith.mulf %129, %93 : vector<2x20xf32>
    %139 = arith.addf %137, %138 : vector<2x20xf32>
    %140 = tpu.concatenate %93, %23 in 1 : vector<2x20xf32>, vector<2x20xf32> -> vector<2x40xf32>
    %141 = arith.truncf %140 : vector<2x40xf32> to vector<2x40xbf16>
    %cst_31 = arith.constant dense<0.000000e+00> : vector<2x80xf32>
    %142 = tpu.matmul %141, %3, %cst_31 {dimension_numbers = #tpu.dot_dimension_numbers<[1], [0], [0], [1], [0, 0, 1, 1], [], []>} : vector<2x40xbf16>, vector<40x80xbf16>, vector<2x80xf32> -> vector<2x80xf32>
    %143 = arith.addf %142, %14 : vector<2x80xf32>
    %144 = vector.extract_strided_slice %143 {offsets = [0, 0], sizes = [2, 40], strides = [1, 1]} : vector<2x80xf32> to vector<2x40xf32>
    %145 = arith.negf %144 : vector<2x40xf32>
    %146 = math.exp %145 : vector<2x40xf32>
    %cst_32 = arith.constant 1.000000e+00 : f32
    %147 = vector.broadcast %cst_32 : f32 to vector<2x40xf32>
    %148 = arith.addf %147, %146 : vector<2x40xf32>
    %149 = arith.divf %147, %148 : vector<2x40xf32>
    %150 = vector.extract_strided_slice %149 {offsets = [0, 0], sizes = [2, 20], strides = [1, 1]} : vector<2x40xf32> to vector<2x20xf32>
    %151 = vector.extract_strided_slice %149 {offsets = [0, 20], sizes = [2, 20], strides = [1, 1]} : vector<2x40xf32> to vector<2x20xf32>
    %152 = vector.extract_strided_slice %143 {offsets = [0, 40], sizes = [2, 20], strides = [1, 1]} : vector<2x80xf32> to vector<2x20xf32>
    %153 = vector.extract_strided_slice %143 {offsets = [0, 60], sizes = [2, 20], strides = [1, 1]} : vector<2x80xf32> to vector<2x20xf32>
    %154 = arith.mulf %150, %153 : vector<2x20xf32>
    %155 = arith.addf %152, %154 : vector<2x20xf32>
    %156 = math.tanh %155 : vector<2x20xf32>
    %cst_33 = arith.constant 1.000000e+00 : f32
    %157 = vector.broadcast %cst_33 : f32 to vector<2x20xf32>
    %158 = arith.subf %157, %151 : vector<2x20xf32>
    %159 = arith.mulf %158, %156 : vector<2x20xf32>
    %160 = arith.mulf %151, %23 : vector<2x20xf32>
    %161 = arith.addf %159, %160 : vector<2x20xf32>
    %162 = vector.extract_strided_slice %20 {offsets = [6, 0], sizes = [2, 60], strides = [1, 1]} : vector<16x60xf32> to vector<2x60xf32>
    %163 = arith.truncf %117 : vector<2x20xf32> to vector<2x20xbf16>
    %cst_34 = arith.constant dense<0.000000e+00> : vector<2x60xf32>
    %164 = tpu.matmul %163, %1, %cst_34 {dimension_numbers = #tpu.dot_dimension_numbers<[1], [0], [0], [1], [0, 0, 1, 1], [], []>} : vector<2x20xbf16>, vector<20x60xbf16>, vector<2x60xf32> -> vector<2x60xf32>
    %165 = arith.addf %164, %8 : vector<2x60xf32>
    %166 = vector.extract_strided_slice %162 {offsets = [0, 0], sizes = [2, 40], strides = [1, 1]} : vector<2x60xf32> to vector<2x40xf32>
    %167 = vector.extract_strided_slice %165 {offsets = [0, 0], sizes = [2, 40], strides = [1, 1]} : vector<2x60xf32> to vector<2x40xf32>
    %168 = arith.addf %166, %167 : vector<2x40xf32>
    %169 = arith.negf %168 : vector<2x40xf32>
    %170 = math.exp %169 : vector<2x40xf32>
    %cst_35 = arith.constant 1.000000e+00 : f32
    %171 = vector.broadcast %cst_35 : f32 to vector<2x40xf32>
    %172 = arith.addf %171, %170 : vector<2x40xf32>
    %173 = arith.divf %171, %172 : vector<2x40xf32>
    %174 = vector.extract_strided_slice %173 {offsets = [0, 0], sizes = [2, 20], strides = [1, 1]} : vector<2x40xf32> to vector<2x20xf32>
    %175 = vector.extract_strided_slice %173 {offsets = [0, 20], sizes = [2, 20], strides = [1, 1]} : vector<2x40xf32> to vector<2x20xf32>
    %176 = vector.extract_strided_slice %162 {offsets = [0, 40], sizes = [2, 20], strides = [1, 1]} : vector<2x60xf32> to vector<2x20xf32>
    %177 = vector.extract_strided_slice %165 {offsets = [0, 40], sizes = [2, 20], strides = [1, 1]} : vector<2x60xf32> to vector<2x20xf32>
    %178 = arith.mulf %174, %177 : vector<2x20xf32>
    %179 = arith.addf %176, %178 : vector<2x20xf32>
    %180 = math.tanh %179 : vector<2x20xf32>
    %cst_36 = arith.constant 1.000000e+00 : f32
    %181 = vector.broadcast %cst_36 : f32 to vector<2x20xf32>
    %182 = arith.subf %181, %175 : vector<2x20xf32>
    %183 = arith.mulf %182, %180 : vector<2x20xf32>
    %184 = arith.mulf %175, %117 : vector<2x20xf32>
    %185 = arith.addf %183, %184 : vector<2x20xf32>
    %186 = tpu.concatenate %117, %139 in 1 : vector<2x20xf32>, vector<2x20xf32> -> vector<2x40xf32>
    %187 = arith.truncf %186 : vector<2x40xf32> to vector<2x40xbf16>
    %cst_37 = arith.constant dense<0.000000e+00> : vector<2x80xf32>
    %188 = tpu.matmul %187, %2, %cst_37 {dimension_numbers = #tpu.dot_dimension_numbers<[1], [0], [0], [1], [0, 0, 1, 1], [], []>} : vector<2x40xbf16>, vector<40x80xbf16>, vector<2x80xf32> -> vector<2x80xf32>
    %189 = arith.addf %188, %11 : vector<2x80xf32>
    %190 = vector.extract_strided_slice %189 {offsets = [0, 0], sizes = [2, 40], strides = [1, 1]} : vector<2x80xf32> to vector<2x40xf32>
    %191 = arith.negf %190 : vector<2x40xf32>
    %192 = math.exp %191 : vector<2x40xf32>
    %cst_38 = arith.constant 1.000000e+00 : f32
    %193 = vector.broadcast %cst_38 : f32 to vector<2x40xf32>
    %194 = arith.addf %193, %192 : vector<2x40xf32>
    %195 = arith.divf %193, %194 : vector<2x40xf32>
    %196 = vector.extract_strided_slice %195 {offsets = [0, 0], sizes = [2, 20], strides = [1, 1]} : vector<2x40xf32> to vector<2x20xf32>
    %197 = vector.extract_strided_slice %195 {offsets = [0, 20], sizes = [2, 20], strides = [1, 1]} : vector<2x40xf32> to vector<2x20xf32>
    %198 = vector.extract_strided_slice %189 {offsets = [0, 40], sizes = [2, 20], strides = [1, 1]} : vector<2x80xf32> to vector<2x20xf32>
    %199 = vector.extract_strided_slice %189 {offsets = [0, 60], sizes = [2, 20], strides = [1, 1]} : vector<2x80xf32> to vector<2x20xf32>
    %200 = arith.mulf %196, %199 : vector<2x20xf32>
    %201 = arith.addf %198, %200 : vector<2x20xf32>
    %202 = math.tanh %201 : vector<2x20xf32>
    %cst_39 = arith.constant 1.000000e+00 : f32
    %203 = vector.broadcast %cst_39 : f32 to vector<2x20xf32>
    %204 = arith.subf %203, %197 : vector<2x20xf32>
    %205 = arith.mulf %204, %202 : vector<2x20xf32>
    %206 = arith.mulf %197, %139 : vector<2x20xf32>
    %207 = arith.addf %205, %206 : vector<2x20xf32>
    %208 = tpu.concatenate %139, %161 in 1 : vector<2x20xf32>, vector<2x20xf32> -> vector<2x40xf32>
    %209 = arith.truncf %208 : vector<2x40xf32> to vector<2x40xbf16>
    %cst_40 = arith.constant dense<0.000000e+00> : vector<2x80xf32>
    %210 = tpu.matmul %209, %3, %cst_40 {dimension_numbers = #tpu.dot_dimension_numbers<[1], [0], [0], [1], [0, 0, 1, 1], [], []>} : vector<2x40xbf16>, vector<40x80xbf16>, vector<2x80xf32> -> vector<2x80xf32>
    %211 = arith.addf %210, %14 : vector<2x80xf32>
    %212 = vector.extract_strided_slice %211 {offsets = [0, 0], sizes = [2, 40], strides = [1, 1]} : vector<2x80xf32> to vector<2x40xf32>
    %213 = arith.negf %212 : vector<2x40xf32>
    %214 = math.exp %213 : vector<2x40xf32>
    %cst_41 = arith.constant 1.000000e+00 : f32
    %215 = vector.broadcast %cst_41 : f32 to vector<2x40xf32>
    %216 = arith.addf %215, %214 : vector<2x40xf32>
    %217 = arith.divf %215, %216 : vector<2x40xf32>
    %218 = vector.extract_strided_slice %217 {offsets = [0, 0], sizes = [2, 20], strides = [1, 1]} : vector<2x40xf32> to vector<2x20xf32>
    %219 = vector.extract_strided_slice %217 {offsets = [0, 20], sizes = [2, 20], strides = [1, 1]} : vector<2x40xf32> to vector<2x20xf32>
    %220 = vector.extract_strided_slice %211 {offsets = [0, 40], sizes = [2, 20], strides = [1, 1]} : vector<2x80xf32> to vector<2x20xf32>
    %221 = vector.extract_strided_slice %211 {offsets = [0, 60], sizes = [2, 20], strides = [1, 1]} : vector<2x80xf32> to vector<2x20xf32>
    %222 = arith.mulf %218, %221 : vector<2x20xf32>
    %223 = arith.addf %220, %222 : vector<2x20xf32>
    %224 = math.tanh %223 : vector<2x20xf32>
    %cst_42 = arith.constant 1.000000e+00 : f32
    %225 = vector.broadcast %cst_42 : f32 to vector<2x20xf32>
    %226 = arith.subf %225, %219 : vector<2x20xf32>
    %227 = arith.mulf %226, %224 : vector<2x20xf32>
    %228 = arith.mulf %219, %161 : vector<2x20xf32>
    %229 = arith.addf %227, %228 : vector<2x20xf32>
    %230 = vector.extract_strided_slice %20 {offsets = [8, 0], sizes = [2, 60], strides = [1, 1]} : vector<16x60xf32> to vector<2x60xf32>
    %231 = arith.truncf %185 : vector<2x20xf32> to vector<2x20xbf16>
    %cst_43 = arith.constant dense<0.000000e+00> : vector<2x60xf32>
    %232 = tpu.matmul %231, %1, %cst_43 {dimension_numbers = #tpu.dot_dimension_numbers<[1], [0], [0], [1], [0, 0, 1, 1], [], []>} : vector<2x20xbf16>, vector<20x60xbf16>, vector<2x60xf32> -> vector<2x60xf32>
    %233 = arith.addf %232, %8 : vector<2x60xf32>
    %234 = vector.extract_strided_slice %230 {offsets = [0, 0], sizes = [2, 40], strides = [1, 1]} : vector<2x60xf32> to vector<2x40xf32>
    %235 = vector.extract_strided_slice %233 {offsets = [0, 0], sizes = [2, 40], strides = [1, 1]} : vector<2x60xf32> to vector<2x40xf32>
    %236 = arith.addf %234, %235 : vector<2x40xf32>
    %237 = arith.negf %236 : vector<2x40xf32>
    %238 = math.exp %237 : vector<2x40xf32>
    %cst_44 = arith.constant 1.000000e+00 : f32
    %239 = vector.broadcast %cst_44 : f32 to vector<2x40xf32>
    %240 = arith.addf %239, %238 : vector<2x40xf32>
    %241 = arith.divf %239, %240 : vector<2x40xf32>
    %242 = vector.extract_strided_slice %241 {offsets = [0, 0], sizes = [2, 20], strides = [1, 1]} : vector<2x40xf32> to vector<2x20xf32>
    %243 = vector.extract_strided_slice %241 {offsets = [0, 20], sizes = [2, 20], strides = [1, 1]} : vector<2x40xf32> to vector<2x20xf32>
    %244 = vector.extract_strided_slice %230 {offsets = [0, 40], sizes = [2, 20], strides = [1, 1]} : vector<2x60xf32> to vector<2x20xf32>
    %245 = vector.extract_strided_slice %233 {offsets = [0, 40], sizes = [2, 20], strides = [1, 1]} : vector<2x60xf32> to vector<2x20xf32>
    %246 = arith.mulf %242, %245 : vector<2x20xf32>
    %247 = arith.addf %244, %246 : vector<2x20xf32>
    %248 = math.tanh %247 : vector<2x20xf32>
    %cst_45 = arith.constant 1.000000e+00 : f32
    %249 = vector.broadcast %cst_45 : f32 to vector<2x20xf32>
    %250 = arith.subf %249, %243 : vector<2x20xf32>
    %251 = arith.mulf %250, %248 : vector<2x20xf32>
    %252 = arith.mulf %243, %185 : vector<2x20xf32>
    %253 = arith.addf %251, %252 : vector<2x20xf32>
    %254 = tpu.concatenate %185, %207 in 1 : vector<2x20xf32>, vector<2x20xf32> -> vector<2x40xf32>
    %255 = arith.truncf %254 : vector<2x40xf32> to vector<2x40xbf16>
    %cst_46 = arith.constant dense<0.000000e+00> : vector<2x80xf32>
    %256 = tpu.matmul %255, %2, %cst_46 {dimension_numbers = #tpu.dot_dimension_numbers<[1], [0], [0], [1], [0, 0, 1, 1], [], []>} : vector<2x40xbf16>, vector<40x80xbf16>, vector<2x80xf32> -> vector<2x80xf32>
    %257 = arith.addf %256, %11 : vector<2x80xf32>
    %258 = vector.extract_strided_slice %257 {offsets = [0, 0], sizes = [2, 40], strides = [1, 1]} : vector<2x80xf32> to vector<2x40xf32>
    %259 = arith.negf %258 : vector<2x40xf32>
    %260 = math.exp %259 : vector<2x40xf32>
    %cst_47 = arith.constant 1.000000e+00 : f32
    %261 = vector.broadcast %cst_47 : f32 to vector<2x40xf32>
    %262 = arith.addf %261, %260 : vector<2x40xf32>
    %263 = arith.divf %261, %262 : vector<2x40xf32>
    %264 = vector.extract_strided_slice %263 {offsets = [0, 0], sizes = [2, 20], strides = [1, 1]} : vector<2x40xf32> to vector<2x20xf32>
    %265 = vector.extract_strided_slice %263 {offsets = [0, 20], sizes = [2, 20], strides = [1, 1]} : vector<2x40xf32> to vector<2x20xf32>
    %266 = vector.extract_strided_slice %257 {offsets = [0, 40], sizes = [2, 20], strides = [1, 1]} : vector<2x80xf32> to vector<2x20xf32>
    %267 = vector.extract_strided_slice %257 {offsets = [0, 60], sizes = [2, 20], strides = [1, 1]} : vector<2x80xf32> to vector<2x20xf32>
    %268 = arith.mulf %264, %267 : vector<2x20xf32>
    %269 = arith.addf %266, %268 : vector<2x20xf32>
    %270 = math.tanh %269 : vector<2x20xf32>
    %cst_48 = arith.constant 1.000000e+00 : f32
    %271 = vector.broadcast %cst_48 : f32 to vector<2x20xf32>
    %272 = arith.subf %271, %265 : vector<2x20xf32>
    %273 = arith.mulf %272, %270 : vector<2x20xf32>
    %274 = arith.mulf %265, %207 : vector<2x20xf32>
    %275 = arith.addf %273, %274 : vector<2x20xf32>
    %276 = tpu.concatenate %207, %229 in 1 : vector<2x20xf32>, vector<2x20xf32> -> vector<2x40xf32>
    %277 = arith.truncf %276 : vector<2x40xf32> to vector<2x40xbf16>
    %cst_49 = arith.constant dense<0.000000e+00> : vector<2x80xf32>
    %278 = tpu.matmul %277, %3, %cst_49 {dimension_numbers = #tpu.dot_dimension_numbers<[1], [0], [0], [1], [0, 0, 1, 1], [], []>} : vector<2x40xbf16>, vector<40x80xbf16>, vector<2x80xf32> -> vector<2x80xf32>
    %279 = arith.addf %278, %14 : vector<2x80xf32>
    %280 = vector.extract_strided_slice %279 {offsets = [0, 0], sizes = [2, 40], strides = [1, 1]} : vector<2x80xf32> to vector<2x40xf32>
    %281 = arith.negf %280 : vector<2x40xf32>
    %282 = math.exp %281 : vector<2x40xf32>
    %cst_50 = arith.constant 1.000000e+00 : f32
    %283 = vector.broadcast %cst_50 : f32 to vector<2x40xf32>
    %284 = arith.addf %283, %282 : vector<2x40xf32>
    %285 = arith.divf %283, %284 : vector<2x40xf32>
    %286 = vector.extract_strided_slice %285 {offsets = [0, 0], sizes = [2, 20], strides = [1, 1]} : vector<2x40xf32> to vector<2x20xf32>
    %287 = vector.extract_strided_slice %285 {offsets = [0, 20], sizes = [2, 20], strides = [1, 1]} : vector<2x40xf32> to vector<2x20xf32>
    %288 = vector.extract_strided_slice %279 {offsets = [0, 40], sizes = [2, 20], strides = [1, 1]} : vector<2x80xf32> to vector<2x20xf32>
    %289 = vector.extract_strided_slice %279 {offsets = [0, 60], sizes = [2, 20], strides = [1, 1]} : vector<2x80xf32> to vector<2x20xf32>
    %290 = arith.mulf %286, %289 : vector<2x20xf32>
    %291 = arith.addf %288, %290 : vector<2x20xf32>
    %292 = math.tanh %291 : vector<2x20xf32>
    %cst_51 = arith.constant 1.000000e+00 : f32
    %293 = vector.broadcast %cst_51 : f32 to vector<2x20xf32>
    %294 = arith.subf %293, %287 : vector<2x20xf32>
    %295 = arith.mulf %294, %292 : vector<2x20xf32>
    %296 = arith.mulf %287, %229 : vector<2x20xf32>
    %297 = arith.addf %295, %296 : vector<2x20xf32>
    %298 = vector.extract_strided_slice %20 {offsets = [10, 0], sizes = [2, 60], strides = [1, 1]} : vector<16x60xf32> to vector<2x60xf32>
    %299 = arith.truncf %253 : vector<2x20xf32> to vector<2x20xbf16>
    %cst_52 = arith.constant dense<0.000000e+00> : vector<2x60xf32>
    %300 = tpu.matmul %299, %1, %cst_52 {dimension_numbers = #tpu.dot_dimension_numbers<[1], [0], [0], [1], [0, 0, 1, 1], [], []>} : vector<2x20xbf16>, vector<20x60xbf16>, vector<2x60xf32> -> vector<2x60xf32>
    %301 = arith.addf %300, %8 : vector<2x60xf32>
    %302 = vector.extract_strided_slice %298 {offsets = [0, 0], sizes = [2, 40], strides = [1, 1]} : vector<2x60xf32> to vector<2x40xf32>
    %303 = vector.extract_strided_slice %301 {offsets = [0, 0], sizes = [2, 40], strides = [1, 1]} : vector<2x60xf32> to vector<2x40xf32>
    %304 = arith.addf %302, %303 : vector<2x40xf32>
    %305 = arith.negf %304 : vector<2x40xf32>
    %306 = math.exp %305 : vector<2x40xf32>
    %cst_53 = arith.constant 1.000000e+00 : f32
    %307 = vector.broadcast %cst_53 : f32 to vector<2x40xf32>
    %308 = arith.addf %307, %306 : vector<2x40xf32>
    %309 = arith.divf %307, %308 : vector<2x40xf32>
    %310 = vector.extract_strided_slice %309 {offsets = [0, 0], sizes = [2, 20], strides = [1, 1]} : vector<2x40xf32> to vector<2x20xf32>
    %311 = vector.extract_strided_slice %309 {offsets = [0, 20], sizes = [2, 20], strides = [1, 1]} : vector<2x40xf32> to vector<2x20xf32>
    %312 = vector.extract_strided_slice %298 {offsets = [0, 40], sizes = [2, 20], strides = [1, 1]} : vector<2x60xf32> to vector<2x20xf32>
    %313 = vector.extract_strided_slice %301 {offsets = [0, 40], sizes = [2, 20], strides = [1, 1]} : vector<2x60xf32> to vector<2x20xf32>
    %314 = arith.mulf %310, %313 : vector<2x20xf32>
    %315 = arith.addf %312, %314 : vector<2x20xf32>
    %316 = math.tanh %315 : vector<2x20xf32>
    %cst_54 = arith.constant 1.000000e+00 : f32
    %317 = vector.broadcast %cst_54 : f32 to vector<2x20xf32>
    %318 = arith.subf %317, %311 : vector<2x20xf32>
    %319 = arith.mulf %318, %316 : vector<2x20xf32>
    %320 = arith.mulf %311, %253 : vector<2x20xf32>
    %321 = arith.addf %319, %320 : vector<2x20xf32>
    %322 = tpu.concatenate %253, %275 in 1 : vector<2x20xf32>, vector<2x20xf32> -> vector<2x40xf32>
    %323 = arith.truncf %322 : vector<2x40xf32> to vector<2x40xbf16>
    %cst_55 = arith.constant dense<0.000000e+00> : vector<2x80xf32>
    %324 = tpu.matmul %323, %2, %cst_55 {dimension_numbers = #tpu.dot_dimension_numbers<[1], [0], [0], [1], [0, 0, 1, 1], [], []>} : vector<2x40xbf16>, vector<40x80xbf16>, vector<2x80xf32> -> vector<2x80xf32>
    %325 = arith.addf %324, %11 : vector<2x80xf32>
    %326 = vector.extract_strided_slice %325 {offsets = [0, 0], sizes = [2, 40], strides = [1, 1]} : vector<2x80xf32> to vector<2x40xf32>
    %327 = arith.negf %326 : vector<2x40xf32>
    %328 = math.exp %327 : vector<2x40xf32>
    %cst_56 = arith.constant 1.000000e+00 : f32
    %329 = vector.broadcast %cst_56 : f32 to vector<2x40xf32>
    %330 = arith.addf %329, %328 : vector<2x40xf32>
    %331 = arith.divf %329, %330 : vector<2x40xf32>
    %332 = vector.extract_strided_slice %331 {offsets = [0, 0], sizes = [2, 20], strides = [1, 1]} : vector<2x40xf32> to vector<2x20xf32>
    %333 = vector.extract_strided_slice %331 {offsets = [0, 20], sizes = [2, 20], strides = [1, 1]} : vector<2x40xf32> to vector<2x20xf32>
    %334 = vector.extract_strided_slice %325 {offsets = [0, 40], sizes = [2, 20], strides = [1, 1]} : vector<2x80xf32> to vector<2x20xf32>
    %335 = vector.extract_strided_slice %325 {offsets = [0, 60], sizes = [2, 20], strides = [1, 1]} : vector<2x80xf32> to vector<2x20xf32>
    %336 = arith.mulf %332, %335 : vector<2x20xf32>
    %337 = arith.addf %334, %336 : vector<2x20xf32>
    %338 = math.tanh %337 : vector<2x20xf32>
    %cst_57 = arith.constant 1.000000e+00 : f32
    %339 = vector.broadcast %cst_57 : f32 to vector<2x20xf32>
    %340 = arith.subf %339, %333 : vector<2x20xf32>
    %341 = arith.mulf %340, %338 : vector<2x20xf32>
    %342 = arith.mulf %333, %275 : vector<2x20xf32>
    %343 = arith.addf %341, %342 : vector<2x20xf32>
    %344 = tpu.concatenate %275, %297 in 1 : vector<2x20xf32>, vector<2x20xf32> -> vector<2x40xf32>
    %345 = arith.truncf %344 : vector<2x40xf32> to vector<2x40xbf16>
    %cst_58 = arith.constant dense<0.000000e+00> : vector<2x80xf32>
    %346 = tpu.matmul %345, %3, %cst_58 {dimension_numbers = #tpu.dot_dimension_numbers<[1], [0], [0], [1], [0, 0, 1, 1], [], []>} : vector<2x40xbf16>, vector<40x80xbf16>, vector<2x80xf32> -> vector<2x80xf32>
    %347 = arith.addf %346, %14 : vector<2x80xf32>
    %348 = vector.extract_strided_slice %347 {offsets = [0, 0], sizes = [2, 40], strides = [1, 1]} : vector<2x80xf32> to vector<2x40xf32>
    %349 = arith.negf %348 : vector<2x40xf32>
    %350 = math.exp %349 : vector<2x40xf32>
    %cst_59 = arith.constant 1.000000e+00 : f32
    %351 = vector.broadcast %cst_59 : f32 to vector<2x40xf32>
    %352 = arith.addf %351, %350 : vector<2x40xf32>
    %353 = arith.divf %351, %352 : vector<2x40xf32>
    %354 = vector.extract_strided_slice %353 {offsets = [0, 0], sizes = [2, 20], strides = [1, 1]} : vector<2x40xf32> to vector<2x20xf32>
    %355 = vector.extract_strided_slice %353 {offsets = [0, 20], sizes = [2, 20], strides = [1, 1]} : vector<2x40xf32> to vector<2x20xf32>
    %356 = vector.extract_strided_slice %347 {offsets = [0, 40], sizes = [2, 20], strides = [1, 1]} : vector<2x80xf32> to vector<2x20xf32>
    %357 = vector.extract_strided_slice %347 {offsets = [0, 60], sizes = [2, 20], strides = [1, 1]} : vector<2x80xf32> to vector<2x20xf32>
    %358 = arith.mulf %354, %357 : vector<2x20xf32>
    %359 = arith.addf %356, %358 : vector<2x20xf32>
    %360 = math.tanh %359 : vector<2x20xf32>
    %cst_60 = arith.constant 1.000000e+00 : f32
    %361 = vector.broadcast %cst_60 : f32 to vector<2x20xf32>
    %362 = arith.subf %361, %355 : vector<2x20xf32>
    %363 = arith.mulf %362, %360 : vector<2x20xf32>
    %364 = arith.mulf %355, %297 : vector<2x20xf32>
    %365 = arith.addf %363, %364 : vector<2x20xf32>
    %366 = vector.extract_strided_slice %20 {offsets = [12, 0], sizes = [2, 60], strides = [1, 1]} : vector<16x60xf32> to vector<2x60xf32>
    %367 = arith.truncf %321 : vector<2x20xf32> to vector<2x20xbf16>
    %cst_61 = arith.constant dense<0.000000e+00> : vector<2x60xf32>
    %368 = tpu.matmul %367, %1, %cst_61 {dimension_numbers = #tpu.dot_dimension_numbers<[1], [0], [0], [1], [0, 0, 1, 1], [], []>} : vector<2x20xbf16>, vector<20x60xbf16>, vector<2x60xf32> -> vector<2x60xf32>
    %369 = arith.addf %368, %8 : vector<2x60xf32>
    %370 = vector.extract_strided_slice %366 {offsets = [0, 0], sizes = [2, 40], strides = [1, 1]} : vector<2x60xf32> to vector<2x40xf32>
    %371 = vector.extract_strided_slice %369 {offsets = [0, 0], sizes = [2, 40], strides = [1, 1]} : vector<2x60xf32> to vector<2x40xf32>
    %372 = arith.addf %370, %371 : vector<2x40xf32>
    %373 = arith.negf %372 : vector<2x40xf32>
    %374 = math.exp %373 : vector<2x40xf32>
    %cst_62 = arith.constant 1.000000e+00 : f32
    %375 = vector.broadcast %cst_62 : f32 to vector<2x40xf32>
    %376 = arith.addf %375, %374 : vector<2x40xf32>
    %377 = arith.divf %375, %376 : vector<2x40xf32>
    %378 = vector.extract_strided_slice %377 {offsets = [0, 0], sizes = [2, 20], strides = [1, 1]} : vector<2x40xf32> to vector<2x20xf32>
    %379 = vector.extract_strided_slice %377 {offsets = [0, 20], sizes = [2, 20], strides = [1, 1]} : vector<2x40xf32> to vector<2x20xf32>
    %380 = vector.extract_strided_slice %366 {offsets = [0, 40], sizes = [2, 20], strides = [1, 1]} : vector<2x60xf32> to vector<2x20xf32>
    %381 = vector.extract_strided_slice %369 {offsets = [0, 40], sizes = [2, 20], strides = [1, 1]} : vector<2x60xf32> to vector<2x20xf32>
    %382 = arith.mulf %378, %381 : vector<2x20xf32>
    %383 = arith.addf %380, %382 : vector<2x20xf32>
    %384 = math.tanh %383 : vector<2x20xf32>
    %cst_63 = arith.constant 1.000000e+00 : f32
    %385 = vector.broadcast %cst_63 : f32 to vector<2x20xf32>
    %386 = arith.subf %385, %379 : vector<2x20xf32>
    %387 = arith.mulf %386, %384 : vector<2x20xf32>
    %388 = arith.mulf %379, %321 : vector<2x20xf32>
    %389 = arith.addf %387, %388 : vector<2x20xf32>
    %390 = tpu.concatenate %321, %343 in 1 : vector<2x20xf32>, vector<2x20xf32> -> vector<2x40xf32>
    %391 = arith.truncf %390 : vector<2x40xf32> to vector<2x40xbf16>
    %cst_64 = arith.constant dense<0.000000e+00> : vector<2x80xf32>
    %392 = tpu.matmul %391, %2, %cst_64 {dimension_numbers = #tpu.dot_dimension_numbers<[1], [0], [0], [1], [0, 0, 1, 1], [], []>} : vector<2x40xbf16>, vector<40x80xbf16>, vector<2x80xf32> -> vector<2x80xf32>
    %393 = arith.addf %392, %11 : vector<2x80xf32>
    %394 = vector.extract_strided_slice %393 {offsets = [0, 0], sizes = [2, 40], strides = [1, 1]} : vector<2x80xf32> to vector<2x40xf32>
    %395 = arith.negf %394 : vector<2x40xf32>
    %396 = math.exp %395 : vector<2x40xf32>
    %cst_65 = arith.constant 1.000000e+00 : f32
    %397 = vector.broadcast %cst_65 : f32 to vector<2x40xf32>
    %398 = arith.addf %397, %396 : vector<2x40xf32>
    %399 = arith.divf %397, %398 : vector<2x40xf32>
    %400 = vector.extract_strided_slice %399 {offsets = [0, 0], sizes = [2, 20], strides = [1, 1]} : vector<2x40xf32> to vector<2x20xf32>
    %401 = vector.extract_strided_slice %399 {offsets = [0, 20], sizes = [2, 20], strides = [1, 1]} : vector<2x40xf32> to vector<2x20xf32>
    %402 = vector.extract_strided_slice %393 {offsets = [0, 40], sizes = [2, 20], strides = [1, 1]} : vector<2x80xf32> to vector<2x20xf32>
    %403 = vector.extract_strided_slice %393 {offsets = [0, 60], sizes = [2, 20], strides = [1, 1]} : vector<2x80xf32> to vector<2x20xf32>
    %404 = arith.mulf %400, %403 : vector<2x20xf32>
    %405 = arith.addf %402, %404 : vector<2x20xf32>
    %406 = math.tanh %405 : vector<2x20xf32>
    %cst_66 = arith.constant 1.000000e+00 : f32
    %407 = vector.broadcast %cst_66 : f32 to vector<2x20xf32>
    %408 = arith.subf %407, %401 : vector<2x20xf32>
    %409 = arith.mulf %408, %406 : vector<2x20xf32>
    %410 = arith.mulf %401, %343 : vector<2x20xf32>
    %411 = arith.addf %409, %410 : vector<2x20xf32>
    %412 = tpu.concatenate %343, %365 in 1 : vector<2x20xf32>, vector<2x20xf32> -> vector<2x40xf32>
    %413 = arith.truncf %412 : vector<2x40xf32> to vector<2x40xbf16>
    %cst_67 = arith.constant dense<0.000000e+00> : vector<2x80xf32>
    %414 = tpu.matmul %413, %3, %cst_67 {dimension_numbers = #tpu.dot_dimension_numbers<[1], [0], [0], [1], [0, 0, 1, 1], [], []>} : vector<2x40xbf16>, vector<40x80xbf16>, vector<2x80xf32> -> vector<2x80xf32>
    %415 = arith.addf %414, %14 : vector<2x80xf32>
    %416 = vector.extract_strided_slice %415 {offsets = [0, 0], sizes = [2, 40], strides = [1, 1]} : vector<2x80xf32> to vector<2x40xf32>
    %417 = arith.negf %416 : vector<2x40xf32>
    %418 = math.exp %417 : vector<2x40xf32>
    %cst_68 = arith.constant 1.000000e+00 : f32
    %419 = vector.broadcast %cst_68 : f32 to vector<2x40xf32>
    %420 = arith.addf %419, %418 : vector<2x40xf32>
    %421 = arith.divf %419, %420 : vector<2x40xf32>
    %422 = vector.extract_strided_slice %421 {offsets = [0, 0], sizes = [2, 20], strides = [1, 1]} : vector<2x40xf32> to vector<2x20xf32>
    %423 = vector.extract_strided_slice %421 {offsets = [0, 20], sizes = [2, 20], strides = [1, 1]} : vector<2x40xf32> to vector<2x20xf32>
    %424 = vector.extract_strided_slice %415 {offsets = [0, 40], sizes = [2, 20], strides = [1, 1]} : vector<2x80xf32> to vector<2x20xf32>
    %425 = vector.extract_strided_slice %415 {offsets = [0, 60], sizes = [2, 20], strides = [1, 1]} : vector<2x80xf32> to vector<2x20xf32>
    %426 = arith.mulf %422, %425 : vector<2x20xf32>
    %427 = arith.addf %424, %426 : vector<2x20xf32>
    %428 = math.tanh %427 : vector<2x20xf32>
    %cst_69 = arith.constant 1.000000e+00 : f32
    %429 = vector.broadcast %cst_69 : f32 to vector<2x20xf32>
    %430 = arith.subf %429, %423 : vector<2x20xf32>
    %431 = arith.mulf %430, %428 : vector<2x20xf32>
    %432 = arith.mulf %423, %365 : vector<2x20xf32>
    %433 = arith.addf %431, %432 : vector<2x20xf32>
    %434 = vector.extract_strided_slice %20 {offsets = [14, 0], sizes = [2, 60], strides = [1, 1]} : vector<16x60xf32> to vector<2x60xf32>
    %435 = arith.truncf %389 : vector<2x20xf32> to vector<2x20xbf16>
    %cst_70 = arith.constant dense<0.000000e+00> : vector<2x60xf32>
    %436 = tpu.matmul %435, %1, %cst_70 {dimension_numbers = #tpu.dot_dimension_numbers<[1], [0], [0], [1], [0, 0, 1, 1], [], []>} : vector<2x20xbf16>, vector<20x60xbf16>, vector<2x60xf32> -> vector<2x60xf32>
    %437 = arith.addf %436, %8 : vector<2x60xf32>
    %438 = vector.extract_strided_slice %434 {offsets = [0, 0], sizes = [2, 40], strides = [1, 1]} : vector<2x60xf32> to vector<2x40xf32>
    %439 = vector.extract_strided_slice %437 {offsets = [0, 0], sizes = [2, 40], strides = [1, 1]} : vector<2x60xf32> to vector<2x40xf32>
    %440 = arith.addf %438, %439 : vector<2x40xf32>
    %441 = arith.negf %440 : vector<2x40xf32>
    %442 = math.exp %441 : vector<2x40xf32>
    %cst_71 = arith.constant 1.000000e+00 : f32
    %443 = vector.broadcast %cst_71 : f32 to vector<2x40xf32>
    %444 = arith.addf %443, %442 : vector<2x40xf32>
    %445 = arith.divf %443, %444 : vector<2x40xf32>
    %446 = vector.extract_strided_slice %445 {offsets = [0, 0], sizes = [2, 20], strides = [1, 1]} : vector<2x40xf32> to vector<2x20xf32>
    %447 = vector.extract_strided_slice %445 {offsets = [0, 20], sizes = [2, 20], strides = [1, 1]} : vector<2x40xf32> to vector<2x20xf32>
    %448 = vector.extract_strided_slice %434 {offsets = [0, 40], sizes = [2, 20], strides = [1, 1]} : vector<2x60xf32> to vector<2x20xf32>
    %449 = vector.extract_strided_slice %437 {offsets = [0, 40], sizes = [2, 20], strides = [1, 1]} : vector<2x60xf32> to vector<2x20xf32>
    %450 = arith.mulf %446, %449 : vector<2x20xf32>
    %451 = arith.addf %448, %450 : vector<2x20xf32>
    %452 = math.tanh %451 : vector<2x20xf32>
    %cst_72 = arith.constant 1.000000e+00 : f32
    %453 = vector.broadcast %cst_72 : f32 to vector<2x20xf32>
    %454 = arith.subf %453, %447 : vector<2x20xf32>
    %455 = arith.mulf %454, %452 : vector<2x20xf32>
    %456 = arith.mulf %447, %389 : vector<2x20xf32>
    %457 = arith.addf %455, %456 : vector<2x20xf32>
    %458 = tpu.concatenate %389, %411 in 1 : vector<2x20xf32>, vector<2x20xf32> -> vector<2x40xf32>
    %459 = arith.truncf %458 : vector<2x40xf32> to vector<2x40xbf16>
    %cst_73 = arith.constant dense<0.000000e+00> : vector<2x80xf32>
    %460 = tpu.matmul %459, %2, %cst_73 {dimension_numbers = #tpu.dot_dimension_numbers<[1], [0], [0], [1], [0, 0, 1, 1], [], []>} : vector<2x40xbf16>, vector<40x80xbf16>, vector<2x80xf32> -> vector<2x80xf32>
    %461 = arith.addf %460, %11 : vector<2x80xf32>
    %462 = vector.extract_strided_slice %461 {offsets = [0, 0], sizes = [2, 40], strides = [1, 1]} : vector<2x80xf32> to vector<2x40xf32>
    %463 = arith.negf %462 : vector<2x40xf32>
    %464 = math.exp %463 : vector<2x40xf32>
    %cst_74 = arith.constant 1.000000e+00 : f32
    %465 = vector.broadcast %cst_74 : f32 to vector<2x40xf32>
    %466 = arith.addf %465, %464 : vector<2x40xf32>
    %467 = arith.divf %465, %466 : vector<2x40xf32>
    %468 = vector.extract_strided_slice %467 {offsets = [0, 0], sizes = [2, 20], strides = [1, 1]} : vector<2x40xf32> to vector<2x20xf32>
    %469 = vector.extract_strided_slice %467 {offsets = [0, 20], sizes = [2, 20], strides = [1, 1]} : vector<2x40xf32> to vector<2x20xf32>
    %470 = vector.extract_strided_slice %461 {offsets = [0, 40], sizes = [2, 20], strides = [1, 1]} : vector<2x80xf32> to vector<2x20xf32>
    %471 = vector.extract_strided_slice %461 {offsets = [0, 60], sizes = [2, 20], strides = [1, 1]} : vector<2x80xf32> to vector<2x20xf32>
    %472 = arith.mulf %468, %471 : vector<2x20xf32>
    %473 = arith.addf %470, %472 : vector<2x20xf32>
    %474 = math.tanh %473 : vector<2x20xf32>
    %cst_75 = arith.constant 1.000000e+00 : f32
    %475 = vector.broadcast %cst_75 : f32 to vector<2x20xf32>
    %476 = arith.subf %475, %469 : vector<2x20xf32>
    %477 = arith.mulf %476, %474 : vector<2x20xf32>
    %478 = arith.mulf %469, %411 : vector<2x20xf32>
    %479 = arith.addf %477, %478 : vector<2x20xf32>
    %480 = tpu.concatenate %411, %433 in 1 : vector<2x20xf32>, vector<2x20xf32> -> vector<2x40xf32>
    %481 = arith.truncf %480 : vector<2x40xf32> to vector<2x40xbf16>
    %cst_76 = arith.constant dense<0.000000e+00> : vector<2x80xf32>
    %482 = tpu.matmul %481, %3, %cst_76 {dimension_numbers = #tpu.dot_dimension_numbers<[1], [0], [0], [1], [0, 0, 1, 1], [], []>} : vector<2x40xbf16>, vector<40x80xbf16>, vector<2x80xf32> -> vector<2x80xf32>
    %483 = arith.addf %482, %14 : vector<2x80xf32>
    %484 = vector.extract_strided_slice %483 {offsets = [0, 0], sizes = [2, 40], strides = [1, 1]} : vector<2x80xf32> to vector<2x40xf32>
    %485 = arith.negf %484 : vector<2x40xf32>
    %486 = math.exp %485 : vector<2x40xf32>
    %cst_77 = arith.constant 1.000000e+00 : f32
    %487 = vector.broadcast %cst_77 : f32 to vector<2x40xf32>
    %488 = arith.addf %487, %486 : vector<2x40xf32>
    %489 = arith.divf %487, %488 : vector<2x40xf32>
    %490 = vector.extract_strided_slice %489 {offsets = [0, 0], sizes = [2, 20], strides = [1, 1]} : vector<2x40xf32> to vector<2x20xf32>
    %491 = vector.extract_strided_slice %489 {offsets = [0, 20], sizes = [2, 20], strides = [1, 1]} : vector<2x40xf32> to vector<2x20xf32>
    %492 = vector.extract_strided_slice %483 {offsets = [0, 40], sizes = [2, 20], strides = [1, 1]} : vector<2x80xf32> to vector<2x20xf32>
    %493 = vector.extract_strided_slice %483 {offsets = [0, 60], sizes = [2, 20], strides = [1, 1]} : vector<2x80xf32> to vector<2x20xf32>
    %494 = arith.mulf %490, %493 : vector<2x20xf32>
    %495 = arith.addf %492, %494 : vector<2x20xf32>
    %496 = math.tanh %495 : vector<2x20xf32>
    %cst_78 = arith.constant 1.000000e+00 : f32
    %497 = vector.broadcast %cst_78 : f32 to vector<2x20xf32>
    %498 = arith.subf %497, %491 : vector<2x20xf32>
    %499 = arith.mulf %498, %496 : vector<2x20xf32>
    %500 = arith.mulf %491, %433 : vector<2x20xf32>
    %501 = arith.addf %499, %500 : vector<2x20xf32>
    %502 = tpu.concatenate %457, %479 in 1 : vector<2x20xf32>, vector<2x20xf32> -> vector<2x40xf32>
    %503 = arith.truncf %502 : vector<2x40xf32> to vector<2x40xbf16>
    %cst_79 = arith.constant dense<0.000000e+00> : vector<2x80xf32>
    %504 = tpu.matmul %503, %2, %cst_79 {dimension_numbers = #tpu.dot_dimension_numbers<[1], [0], [0], [1], [0, 0, 1, 1], [], []>} : vector<2x40xbf16>, vector<40x80xbf16>, vector<2x80xf32> -> vector<2x80xf32>
    %505 = arith.addf %504, %11 : vector<2x80xf32>
    %506 = vector.extract_strided_slice %505 {offsets = [0, 0], sizes = [2, 40], strides = [1, 1]} : vector<2x80xf32> to vector<2x40xf32>
    %507 = arith.negf %506 : vector<2x40xf32>
    %508 = math.exp %507 : vector<2x40xf32>
    %cst_80 = arith.constant 1.000000e+00 : f32
    %509 = vector.broadcast %cst_80 : f32 to vector<2x40xf32>
    %510 = arith.addf %509, %508 : vector<2x40xf32>
    %511 = arith.divf %509, %510 : vector<2x40xf32>
    %512 = vector.extract_strided_slice %511 {offsets = [0, 0], sizes = [2, 20], strides = [1, 1]} : vector<2x40xf32> to vector<2x20xf32>
    %513 = vector.extract_strided_slice %511 {offsets = [0, 20], sizes = [2, 20], strides = [1, 1]} : vector<2x40xf32> to vector<2x20xf32>
    %514 = vector.extract_strided_slice %505 {offsets = [0, 40], sizes = [2, 20], strides = [1, 1]} : vector<2x80xf32> to vector<2x20xf32>
    %515 = vector.extract_strided_slice %505 {offsets = [0, 60], sizes = [2, 20], strides = [1, 1]} : vector<2x80xf32> to vector<2x20xf32>
    %516 = arith.mulf %512, %515 : vector<2x20xf32>
    %517 = arith.addf %514, %516 : vector<2x20xf32>
    %518 = math.tanh %517 : vector<2x20xf32>
    %cst_81 = arith.constant 1.000000e+00 : f32
    %519 = vector.broadcast %cst_81 : f32 to vector<2x20xf32>
    %520 = arith.subf %519, %513 : vector<2x20xf32>
    %521 = arith.mulf %520, %518 : vector<2x20xf32>
    %522 = arith.mulf %513, %479 : vector<2x20xf32>
    %523 = arith.addf %521, %522 : vector<2x20xf32>
    %524 = tpu.concatenate %479, %501 in 1 : vector<2x20xf32>, vector<2x20xf32> -> vector<2x40xf32>
    %525 = arith.truncf %524 : vector<2x40xf32> to vector<2x40xbf16>
    %cst_82 = arith.constant dense<0.000000e+00> : vector<2x80xf32>
    %526 = tpu.matmul %525, %3, %cst_82 {dimension_numbers = #tpu.dot_dimension_numbers<[1], [0], [0], [1], [0, 0, 1, 1], [], []>} : vector<2x40xbf16>, vector<40x80xbf16>, vector<2x80xf32> -> vector<2x80xf32>
    %527 = arith.addf %526, %14 : vector<2x80xf32>
    %528 = vector.extract_strided_slice %527 {offsets = [0, 0], sizes = [2, 40], strides = [1, 1]} : vector<2x80xf32> to vector<2x40xf32>
    %529 = arith.negf %528 : vector<2x40xf32>
    %530 = math.exp %529 : vector<2x40xf32>
    %cst_83 = arith.constant 1.000000e+00 : f32
    %531 = vector.broadcast %cst_83 : f32 to vector<2x40xf32>
    %532 = arith.addf %531, %530 : vector<2x40xf32>
    %533 = arith.divf %531, %532 : vector<2x40xf32>
    %534 = vector.extract_strided_slice %533 {offsets = [0, 0], sizes = [2, 20], strides = [1, 1]} : vector<2x40xf32> to vector<2x20xf32>
    %535 = vector.extract_strided_slice %533 {offsets = [0, 20], sizes = [2, 20], strides = [1, 1]} : vector<2x40xf32> to vector<2x20xf32>
    %536 = vector.extract_strided_slice %527 {offsets = [0, 40], sizes = [2, 20], strides = [1, 1]} : vector<2x80xf32> to vector<2x20xf32>
    %537 = vector.extract_strided_slice %527 {offsets = [0, 60], sizes = [2, 20], strides = [1, 1]} : vector<2x80xf32> to vector<2x20xf32>
    %538 = arith.mulf %534, %537 : vector<2x20xf32>
    %539 = arith.addf %536, %538 : vector<2x20xf32>
    %540 = math.tanh %539 : vector<2x20xf32>
    %cst_84 = arith.constant 1.000000e+00 : f32
    %541 = vector.broadcast %cst_84 : f32 to vector<2x20xf32>
    %542 = arith.subf %541, %535 : vector<2x20xf32>
    %543 = arith.mulf %542, %540 : vector<2x20xf32>
    %544 = arith.mulf %535, %501 : vector<2x20xf32>
    %545 = arith.addf %543, %544 : vector<2x20xf32>
    %546 = tpu.concatenate %523, %545 in 1 : vector<2x20xf32>, vector<2x20xf32> -> vector<2x40xf32>
    %547 = arith.truncf %546 : vector<2x40xf32> to vector<2x40xbf16>
    %cst_85 = arith.constant dense<0.000000e+00> : vector<2x80xf32>
    %548 = tpu.matmul %547, %3, %cst_85 {dimension_numbers = #tpu.dot_dimension_numbers<[1], [0], [0], [1], [0, 0, 1, 1], [], []>} : vector<2x40xbf16>, vector<40x80xbf16>, vector<2x80xf32> -> vector<2x80xf32>
    %549 = arith.addf %548, %14 : vector<2x80xf32>
    %550 = vector.extract_strided_slice %549 {offsets = [0, 0], sizes = [2, 40], strides = [1, 1]} : vector<2x80xf32> to vector<2x40xf32>
    %551 = arith.negf %550 : vector<2x40xf32>
    %552 = math.exp %551 : vector<2x40xf32>
    %cst_86 = arith.constant 1.000000e+00 : f32
    %553 = vector.broadcast %cst_86 : f32 to vector<2x40xf32>
    %554 = arith.addf %553, %552 : vector<2x40xf32>
    %555 = arith.divf %553, %554 : vector<2x40xf32>
    %556 = vector.extract_strided_slice %555 {offsets = [0, 0], sizes = [2, 20], strides = [1, 1]} : vector<2x40xf32> to vector<2x20xf32>
    %557 = vector.extract_strided_slice %555 {offsets = [0, 20], sizes = [2, 20], strides = [1, 1]} : vector<2x40xf32> to vector<2x20xf32>
    %558 = vector.extract_strided_slice %549 {offsets = [0, 40], sizes = [2, 20], strides = [1, 1]} : vector<2x80xf32> to vector<2x20xf32>
    %559 = vector.extract_strided_slice %549 {offsets = [0, 60], sizes = [2, 20], strides = [1, 1]} : vector<2x80xf32> to vector<2x20xf32>
    %560 = arith.mulf %556, %559 : vector<2x20xf32>
    %561 = arith.addf %558, %560 : vector<2x20xf32>
    %562 = math.tanh %561 : vector<2x20xf32>
    %cst_87 = arith.constant 1.000000e+00 : f32
    %563 = vector.broadcast %cst_87 : f32 to vector<2x20xf32>
    %564 = arith.subf %563, %557 : vector<2x20xf32>
    %565 = arith.mulf %564, %562 : vector<2x20xf32>
    %566 = arith.mulf %557, %545 : vector<2x20xf32>
    %567 = arith.addf %565, %566 : vector<2x20xf32>
    %568 = tpu.concatenate %161, %229, %297, %365, %433, %501, %545, %567 in 0 : vector<2x20xf32>, vector<2x20xf32>, vector<2x20xf32>, vector<2x20xf32>, vector<2x20xf32>, vector<2x20xf32>, vector<2x20xf32>, vector<2x20xf32> -> vector<16x20xf32>
    %569 = arith.truncf %568 : vector<16x20xf32> to vector<16x20xbf16>
    %cst_88 = arith.constant dense<0.000000e+00> : vector<16x1xf32>
    %570 = tpu.matmul %569, %4, %cst_88 {dimension_numbers = #tpu.dot_dimension_numbers<[1], [0], [0], [1], [0, 0, 1, 1], [], []>} : vector<16x20xbf16>, vector<20x1xbf16>, vector<16x1xf32> -> vector<16x1xf32>
    %571 = vector.broadcast %15 : vector<1x1xf32> to vector<16x1xf32>
    %572 = arith.addf %570, %571 : vector<16x1xf32>
    %c0_89 = arith.constant 0 : index
    %c0_90 = arith.constant 0 : index
    %573 = vector.load %arg3[%c0_89, %c0_90] : memref<16x1xf32, #tpu.memory_space<vmem>>, vector<16x1xf32>
    tpu.vector_store %arg3[%c0_89, %c0_90], %572 {strides = array<i32>} : memref<16x1xf32, #tpu.memory_space<vmem>>, vector<16x1xf32>,
    return
  }
}

</mosaic_0001>

<llo_original>
// kernel: gru_forward.1
$region0: #{gru_forward.1}
  #allocation0 [shape = 'u32[]', space=smem, size = 0x4, offset = 0x4, fixed_abs, tag = 'smem constant byte address 0x4 - core index']
  #allocation1 [shape = 'u32[144,128]{1,0:T(1,128)}', space=vmem, size = 0x12000, scoped, tag = 'internal scratch']
  %s0 = inlined_call_operand.vmem [shape: f32[16,16], index: 0, kind: input, shape index: {}]
  %s1 = inlined_call_operand.vmem [shape: bf16[176,80], index: 1, kind: input, shape index: {}]
  %s2 = inlined_call_operand.vmem [shape: f32[8,80], index: 2, kind: input, shape index: {}]
  %s3 = inlined_call_operand.vmem [shape: f32[16,1], index: 3, kind: output, shape index: {}]
  %s4 = sld [smem:[#allocation0]]
  $region22: #{gru_forward.1} parent=0
    _
  %s6 = ssub.s32 1, %s4
  %s7 = scalar_select 0, %s6, %s4
  // Predicated region
  $region2: #{gru_forward.1} parent=0 // pred_check
    _
  $region3: #{gru_forward.1} parent=0 // pred_check_branch
    %9 = sbr.rel (0) target = $region5
  $region4: #{gru_forward.1} parent=0 // pred_region
    _
  $region5: #{gru_forward.1} parent=0 // pred_fallthru
    _
  // Predicated region
  $region6: #{gru_forward.1} parent=0 // pred_check
    _
  $region7: #{gru_forward.1} parent=0 // pred_check_branch
    %11 = sbr.rel (0) target = $region9
  $region8: #{gru_forward.1} parent=0 // pred_region
    _
  $region9: #{gru_forward.1} parent=0 // pred_fallthru
    _
  // Predicated region
  $region10: #{gru_forward.1} parent=0 // pred_check
    _
  $region11: #{gru_forward.1} parent=0 // pred_check_branch
    %13 = sbr.rel (0) target = $region13
  $region12: #{gru_forward.1} parent=0 // pred_region
    _
  $region13: #{gru_forward.1} parent=0 // pred_fallthru
    _
  %v15 = vld [vmem:[%s1] sm:$0xf]
  %v16 = vld [vmem:[%s1 + $0x4] sm:$0xf]
  %v17 = vld [vmem:[%s1 + $0x8] sm:$0xf]
  %v18 = vld [vmem:[%s1 + $0xc] sm:$0xf]
  %v19 = vld [vmem:[%s1 + $0x10] sm:$0x3]
  %v20 = vld [vmem:[%s1 + $0x18] sm:$0xf]
  %v21 = vld [vmem:[%s1 + $0x1c] sm:$0xf]
  %v22 = vld [vmem:[%s1 + $0x20] sm:$0xf]
  %v23 = vld [vmem:[%s1 + $0x24] sm:$0xf]
  %v24 = vld [vmem:[%s1 + $0x28] sm:$0xf]
  %v25 = vld [vmem:[%s1 + $0x30] sm:$0xf]
  %v26 = vld [vmem:[%s1 + $0x34] sm:$0xf]
  %v27 = vld [vmem:[%s1 + $0x38] sm:$0xf]
  %v28 = vld [vmem:[%s1 + $0x3c] sm:$0xf]
  %v29 = vld [vmem:[%s1 + $0x40] sm:$0xf]
  %v30 = vld [vmem:[%s1 + $0x48] sm:$0xf]
  %v31 = vld [vmem:[%s1 + $0x4c] sm:$0xf]
  %v32 = vld [vmem:[%s1 + $0x50] sm:$0x3]
  %v33 = vld [vmem:[%s2] sm:$0x1]
  %v34 = vld [vmem:[%s2 + $0x1] sm:$0x1]
  %v35 = vlaneseq
  %v36 = vshrl.u32 %v35, 7
  %v37 = vsub.s32 0, %v36
  %v38 = vrot.slane %v34, %v37
  %v39 = vld [vmem:[%s2 + $0x2] sm:$0x1]
  %v40 = vlaneseq
  %v41 = vshrl.u32 %v40, 7
  %v42 = vsub.s32 0, %v41
  %v43 = vrot.slane %v39, %v42
  %v44 = vld [vmem:[%s2 + $0x3] sm:$0x1]
  %v45 = vlaneseq
  %v46 = vshrl.u32 %v45, 7
  %v47 = vsub.s32 0, %v46
  %v48 = vrot.slane %v44, %v47
  %v49 = vld [vmem:[%s2 + $0x4] sm:$0x1]
  %v50 = vld [vmem:[%s0] sm:$0xff]
  %v51 = vld [vmem:[%s0 + $0x8] sm:$0xff]
  %v52 = vpack.c.bf16 %v51, %v50
  %v53 = vlaneseq
  %v54 = vshrl.u32 %v53, 7
  %v55 = vsub.s32 0, %v54
  %v56 = vrot.slane %v33, %v55
  %v59 = vunpack.c.l.b16 %v15
  %v60 = vunpack.c.l.b16 %v16
  %v61 = vpack.c.b16 %v60, %v59
  %vm63 = vcmask 130048
  %v65 = vsel %vm63, %v52, 0
  %67 = vmatprep.subr.bf16.mxu0 0
  %68 = vmatpush1.bf16.msra.mxu0 0
  %69 = vmatprep.subr.bf16.mxu0 0
  %70 = vmatpush1.bf16.msra.mxu0 0
  %71 = vmatprep.subr.bf16.mxu0 0
  %72 = vmatpush1.bf16.msra.mxu0 0
  %73 = vmatprep.subr.bf16.mxu0 0
  %74 = vmatpush1.bf16.msra.mxu0 0
  %75 = vmatprep.subr.bf16.mxu0 0
  %76 = vmatpush1.bf16.msra.mxu0 0
  %77 = vmatprep.subr.bf16.mxu0 0
  %78 = vmatpush1.bf16.msra.mxu0 0
  %79 = vmatprep.subr.bf16.mxu0 0
  %80 = vmatpush1.bf16.msra.mxu0 0
  %81 = vmatprep.subr.bf16.mxu0 0
  %82 = vmatpush1.bf16.msra.mxu0 %v61
  %83 = vmatprep.subr.bf16.mxu0 0
  %84 = vmatpush2.bf16.msra.mxu0 0
  %85 = vmatprep.subr.bf16.mxu0 0
  %86 = vmatpush2.bf16.msra.mxu0 0
  %87 = vmatprep.subr.bf16.mxu0 0
  %88 = vmatpush2.bf16.msra.mxu0 0
  %89 = vmatprep.subr.bf16.mxu0 0
  %90 = vmatpush2.bf16.msra.mxu0 0
  %91 = vmatprep.subr.bf16.mxu0 0
  %92 = vmatpush2.bf16.msra.mxu0 0
  %93 = vmatprep.subr.bf16.mxu0 0
  %94 = vmatpush2.bf16.msra.mxu0 0
  %95 = vmatprep.subr.bf16.mxu0 0
  %96 = vmatpush2.bf16.msra.mxu0 0
  %97 = vmatprep.subr.bf16.mxu0 0
  %98 = vmatpush2.bf16.msra.mxu0 0
  %99 = vmatprep.mubr.bf16.mxu0 0
  %100 = vmatmul.mubr.bf16.gmra.mxu0 %v65
  %v101 = vpop.f32.mrf.mxu0
  %v102 = vadd.f32 %v56, %v101
  %v103 = vpop.f32.mrf.mxu0
  %v104 = vpop.f32.mrf.mxu0
  %v105 = vadd.f32 %v56, %v104
  %v106 = vpop.f32.mrf.mxu0
  %107 = vdwg.mxu0
  %v111 = vunpack.c.l.b16 %v17
  %v112 = vunpack.c.l.b16 %v18
  %v113 = vunpack.c.l.b16 %v19
  %v114 = vpack.c.b16 %v112, %v111
  %v115 = vpack.c.b16 %v113, %v113
  %vm117 = vcmask 162816
  %v119 = vsel %vm117, 0, 0
  %vm121 = vcmask 1041408
  %v123 = vsel %vm121, %v115, 0
  %125 = vmatprep.subr.bf16.mxu0 0
  %126 = vmatpush1.bf16.msra.mxu0 0
  %127 = vmatprep.subr.bf16.mxu0 0
  %128 = vmatpush1.bf16.msra.mxu0 0
  %129 = vmatprep.subr.bf16.mxu0 0
  %130 = vmatpush1.bf16.msra.mxu0 0
  %131 = vmatprep.subr.bf16.mxu0 0
  %132 = vmatpush1.bf16.msra.mxu0 0
  %133 = vmatprep.subr.bf16.mxu0 0
  %134 = vmatpush1.bf16.msra.mxu0 0
  %135 = vmatprep.subr.bf16.mxu0 0
  %136 = vmatpush1.bf16.msra.mxu0 0
  %137 = vmatprep.subr.bf16.mxu0 0
  %138 = vmatpush1.bf16.msra.mxu0 %v123
  %139 = vmatprep.subr.bf16.mxu0 0
  %140 = vmatpush1.bf16.msra.mxu0 %v114
  %141 = vmatprep.subr.bf16.mxu0 0
  %142 = vmatpush2.bf16.msra.mxu0 0
  %143 = vmatprep.subr.bf16.mxu0 0
  %144 = vmatpush2.bf16.msra.mxu0 0
  %145 = vmatprep.subr.bf16.mxu0 0
  %146 = vmatpush2.bf16.msra.mxu0 0
  %147 = vmatprep.subr.bf16.mxu0 0
  %148 = vmatpush2.bf16.msra.mxu0 0
  %149 = vmatprep.subr.bf16.mxu0 0
  %150 = vmatpush2.bf16.msra.mxu0 0
  %151 = vmatprep.subr.bf16.mxu0 0
  %152 = vmatpush2.bf16.msra.mxu0 0
  %153 = vmatprep.subr.bf16.mxu0 0
  %154 = vmatpush2.bf16.msra.mxu0 0
  %155 = vmatprep.subr.bf16.mxu0 0
  %156 = vmatpush2.bf16.msra.mxu0 0
  %157 = vmatprep.mubr.bf16.mxu0 0
  %158 = vmatmul.mubr.bf16.gmra.mxu0 %v119
  %v159 = vpop.f32.mrf.mxu0
  %v160 = vadd.f32 %v38, %v159
  %v161 = vpop.f32.mrf.mxu0
  %v162 = vpop.f32.mrf.mxu0
  %v163 = vpop.f32.mrf.mxu0
  %164 = vdwg.mxu0
  %v165 = vadd.f32 %v102, %v160
  %v166 = vxor.u32 %v165, 2147483648
  %v167 = vmul.f32 %v166, 1.442695
  %v168 = vpow.pop %v167
  %v169 = vadd.f32 %v168, 1.0
  %v170 = vrcp.pop %v169
  %v171 = vmul.f32 1.0, %v170
  %173 = vrot.lane.b32.xlu0 %v160, 88
  %v174 = vpop.permute.xlu0 %173
  %v176 = vmul.f32 %v171, %v174
  %178 = vrot.lane.b32.xlu0 %v176, 40
  %v179 = vpop.permute.xlu0 %178
  %v181 = vadd.f32 %v102, %v179
  %v182 = vtanh.pop %v181
  %v183 = vsub.f32 1.0, %v171
  %185 = vrot.lane.b32.xlu0 %v182, 108
  %v186 = vpop.permute.xlu0 %185
  %v188 = vmul.f32 %v183, %v186
  %v189 = vmul.f32 %v171, 0.0
  %v190 = vadd.f32 %v188, %v189
  %v191 = vpack.c.bf16 %v190, %v190
  %193 = vrot.lane.b32.xlu0 %v191, 108
  %v194 = vpop.permute.xlu0 %193
  %v196 = vsel %vm117, %v194, 0
  %198 = vmatprep.subr.bf16.mxu0 0
  %199 = vmatpush1.bf16.msra.mxu0 0
  %200 = vmatprep.subr.bf16.mxu0 0
  %201 = vmatpush1.bf16.msra.mxu0 0
  %202 = vmatprep.subr.bf16.mxu0 0
  %203 = vmatpush1.bf16.msra.mxu0 0
  %204 = vmatprep.subr.bf16.mxu0 0
  %205 = vmatpush1.bf16.msra.mxu0 0
  %206 = vmatprep.subr.bf16.mxu0 0
  %207 = vmatpush1.bf16.msra.mxu0 0
  %208 = vmatprep.subr.bf16.mxu0 0
  %209 = vmatpush1.bf16.msra.mxu0 0
  %210 = vmatprep.subr.bf16.mxu0 0
  %211 = vmatpush1.bf16.msra.mxu0 %v123
  %212 = vmatprep.subr.bf16.mxu0 0
  %213 = vmatpush1.bf16.msra.mxu0 %v114
  %214 = vmatprep.subr.bf16.mxu0 0
  %215 = vmatpush2.bf16.msra.mxu0 0
  %216 = vmatprep.subr.bf16.mxu0 0
  %217 = vmatpush2.bf16.msra.mxu0 0
  %218 = vmatprep.subr.bf16.mxu0 0
  %219 = vmatpush2.bf16.msra.mxu0 0
  %220 = vmatprep.subr.bf16.mxu0 0
  %221 = vmatpush2.bf16.msra.mxu0 0
  %222 = vmatprep.subr.bf16.mxu0 0
  %223 = vmatpush2.bf16.msra.mxu0 0
  %224 = vmatprep.subr.bf16.mxu0 0
  %225 = vmatpush2.bf16.msra.mxu0 0
  %226 = vmatprep.subr.bf16.mxu0 0
  %227 = vmatpush2.bf16.msra.mxu0 0
  %228 = vmatprep.subr.bf16.mxu0 0
  %229 = vmatpush2.bf16.msra.mxu0 0
  %230 = vmatprep.mubr.bf16.mxu0 0
  %231 = vmatmul.mubr.bf16.gmra.mxu0 %v196
  %v232 = vpop.f32.mrf.mxu0
  %v233 = vadd.f32 %v38, %v232
  %v234 = vpop.f32.mrf.mxu0
  %v235 = vpop.f32.mrf.mxu0
  %v236 = vpop.f32.mrf.mxu0
  %237 = vdwg.mxu0
  %v239 = vrot.slane %v233, 6
  %v241 = vadd.f32 %v102, %v239
  %v242 = vxor.u32 %v241, 2147483648
  %v243 = vmul.f32 %v242, 1.442695
  %v244 = vpow.pop %v243
  %v245 = vadd.f32 %v244, 1.0
  %v246 = vrcp.pop %v245
  %v247 = vmul.f32 1.0, %v246
  %248 = vrot.lane.b32.xlu0 %v239, 88
  %v249 = vpop.permute.xlu0 %248
  %v251 = vmul.f32 %v247, %v249
  %253 = vrot.lane.b32.xlu0 %v251, 40
  %v254 = vpop.permute.xlu0 %253
  %v256 = vadd.f32 %v102, %v254
  %v257 = vtanh.pop %v256
  %v258 = vsub.f32 1.0, %v247
  %260 = vrot.lane.b32.xlu0 %v257, 108
  %v261 = vpop.permute.xlu0 %260
  %v263 = vmul.f32 %v258, %v261
  %v265 = vrot.slane %v190, 6
  %v267 = vmul.f32 %v247, %v265
  %v268 = vadd.f32 %v263, %v267
  %269 = vrot.lane.b32.xlu0 %v190, 108
  %v270 = vpop.permute.xlu0 %269
  %v272 = vsel %vm117, %v270, 0.0
  %v273 = vpack.c.bf16 %v272, %v272
  %v279 = vunpack.c.l.b16 %v20
  %v280 = vunpack.c.l.b16 %v21
  %v281 = vunpack.c.l.b16 %v22
  %v282 = vunpack.c.l.b16 %v23
  %v283 = vunpack.c.l.b16 %v24
  %v284 = vpack.c.b16 %v280, %v279
  %v285 = vpack.c.b16 %v282, %v281
  %v286 = vpack.c.b16 %v283, %v283
  %vm289 = vcmask 326656
  %v291 = vsel %vm289, %v273, 0
  %vm293 = vcmask 1043456
  %v295 = vsel %vm293, %v286, 0
  %297 = vmatprep.subr.bf16.mxu0 0
  %298 = vmatpush1.bf16.msra.mxu0 0
  %299 = vmatprep.subr.bf16.mxu0 0
  %300 = vmatpush1.bf16.msra.mxu0 0
  %301 = vmatprep.subr.bf16.mxu0 0
  %302 = vmatpush1.bf16.msra.mxu0 0
  %303 = vmatprep.subr.bf16.mxu0 0
  %304 = vmatpush1.bf16.msra.mxu0 0
  %305 = vmatprep.subr.bf16.mxu0 0
  %306 = vmatpush1.bf16.msra.mxu0 0
  %307 = vmatprep.subr.bf16.mxu0 0
  %308 = vmatpush1.bf16.msra.mxu0 %v295
  %309 = vmatprep.subr.bf16.mxu0 0
  %310 = vmatpush1.bf16.msra.mxu0 %v285
  %311 = vmatprep.subr.bf16.mxu0 0
  %312 = vmatpush1.bf16.msra.mxu0 %v284
  %313 = vmatprep.subr.bf16.mxu0 0
  %314 = vmatpush2.bf16.msra.mxu0 0
  %315 = vmatprep.subr.bf16.mxu0 0
  %316 = vmatpush2.bf16.msra.mxu0 0
  %317 = vmatprep.subr.bf16.mxu0 0
  %318 = vmatpush2.bf16.msra.mxu0 0
  %319 = vmatprep.subr.bf16.mxu0 0
  %320 = vmatpush2.bf16.msra.mxu0 0
  %321 = vmatprep.subr.bf16.mxu0 0
  %322 = vmatpush2.bf16.msra.mxu0 0
  %323 = vmatprep.subr.bf16.mxu0 0
  %324 = vmatpush2.bf16.msra.mxu0 0
  %325 = vmatprep.subr.bf16.mxu0 0
  %326 = vmatpush2.bf16.msra.mxu0 0
  %327 = vmatprep.subr.bf16.mxu0 0
  %328 = vmatpush2.bf16.msra.mxu0 0
  %329 = vmatprep.mubr.bf16.mxu0 0
  %330 = vmatmul.mubr.bf16.gmra.mxu0 %v291
  %v331 = vpop.f32.mrf.mxu0
  %v332 = vadd.f32 %v43, %v331
  %v333 = vpop.f32.mrf.mxu0
  %v334 = vpop.f32.mrf.mxu0
  %v335 = vpop.f32.mrf.mxu0
  %336 = vdwg.mxu0
  %v337 = vxor.u32 %v332, 2147483648
  %v338 = vmul.f32 %v337, 1.442695
  %v339 = vpow.pop %v338
  %v340 = vadd.f32 %v339, 1.0
  %v341 = vrcp.pop %v340
  %v342 = vmul.f32 1.0, %v341
  %344 = vrot.lane.b32.xlu0 %v332, 68
  %v345 = vpop.permute.xlu0 %344
  %v347 = vmul.f32 %v342, %v345
  %349 = vrot.lane.b32.xlu0 %v347, 40
  %v350 = vpop.permute.xlu0 %349
  %v352 = vadd.f32 %v332, %v350
  %v353 = vtanh.pop %v352
  %v354 = vsub.f32 1.0, %v342
  %356 = vrot.lane.b32.xlu0 %v353, 108
  %v357 = vpop.permute.xlu0 %356
  %v359 = vmul.f32 %v354, %v357
  %v360 = vmul.f32 %v342, 0.0
  %v361 = vadd.f32 %v359, %v360
  %v362 = vpack.c.bf16 %v268, %v268
  %v364 = vrot.slane %v362, 1
  %365 = vrot.lane.b32.xlu0 %v364, 108
  %v366 = vpop.permute.xlu0 %365
  %v368 = vsel %vm117, %v366, 0
  %370 = vmatprep.subr.bf16.mxu0 0
  %371 = vmatpush1.bf16.msra.mxu0 0
  %372 = vmatprep.subr.bf16.mxu0 0
  %373 = vmatpush1.bf16.msra.mxu0 0
  %374 = vmatprep.subr.bf16.mxu0 0
  %375 = vmatpush1.bf16.msra.mxu0 0
  %376 = vmatprep.subr.bf16.mxu0 0
  %377 = vmatpush1.bf16.msra.mxu0 0
  %378 = vmatprep.subr.bf16.mxu0 0
  %379 = vmatpush1.bf16.msra.mxu0 0
  %380 = vmatprep.subr.bf16.mxu0 0
  %381 = vmatpush1.bf16.msra.mxu0 0
  %382 = vmatprep.subr.bf16.mxu0 0
  %383 = vmatpush1.bf16.msra.mxu0 %v123
  %384 = vmatprep.subr.bf16.mxu0 0
  %385 = vmatpush1.bf16.msra.mxu0 %v114
  %386 = vmatprep.subr.bf16.mxu0 0
  %387 = vmatpush2.bf16.msra.mxu0 0
  %388 = vmatprep.subr.bf16.mxu0 0
  %389 = vmatpush2.bf16.msra.mxu0 0
  %390 = vmatprep.subr.bf16.mxu0 0
  %391 = vmatpush2.bf16.msra.mxu0 0
  %392 = vmatprep.subr.bf16.mxu0 0
  %393 = vmatpush2.bf16.msra.mxu0 0
  %394 = vmatprep.subr.bf16.mxu0 0
  %395 = vmatpush2.bf16.msra.mxu0 0
  %396 = vmatprep.subr.bf16.mxu0 0
  %397 = vmatpush2.bf16.msra.mxu0 0
  %398 = vmatprep.subr.bf16.mxu0 0
  %399 = vmatpush2.bf16.msra.mxu0 0
  %400 = vmatprep.subr.bf16.mxu0 0
  %401 = vmatpush2.bf16.msra.mxu0 0
  %402 = vmatprep.mubr.bf16.mxu0 0
  %403 = vmatmul.mubr.bf16.gmra.mxu0 %v368
  %v404 = vpop.f32.mrf.mxu0
  %v405 = vadd.f32 %v38, %v404
  %v406 = vpop.f32.mrf.mxu0
  %v407 = vpop.f32.mrf.mxu0
  %v408 = vpop.f32.mrf.mxu0
  %409 = vdwg.mxu0
  %v411 = vrot.slane %v405, 4
  %v413 = vadd.f32 %v102, %v411
  %v414 = vxor.u32 %v413, 2147483648
  %v415 = vmul.f32 %v414, 1.442695
  %v416 = vpow.pop %v415
  %v417 = vadd.f32 %v416, 1.0
  %v418 = vrcp.pop %v417
  %v419 = vmul.f32 1.0, %v418
  %420 = vrot.lane.b32.xlu0 %v411, 88
  %v421 = vpop.permute.xlu0 %420
  %v423 = vmul.f32 %v419, %v421
  %425 = vrot.lane.b32.xlu0 %v423, 40
  %v426 = vpop.permute.xlu0 %425
  %v428 = vadd.f32 %v102, %v426
  %v429 = vtanh.pop %v428
  %v430 = vsub.f32 1.0, %v419
  %432 = vrot.lane.b32.xlu0 %v429, 108
  %v433 = vpop.permute.xlu0 %432
  %v435 = vmul.f32 %v430, %v433
  %v437 = vrot.slane %v268, 6
  %v439 = vmul.f32 %v419, %v437
  %v440 = vadd.f32 %v435, %v439
  %441 = vrot.lane.b32.xlu0 %v268, 108
  %v442 = vpop.permute.xlu0 %441
  %v445 = vrot.slane %v361, 6
  %v447 = vsel %vm117, %v442, %v445
  %v448 = vpack.c.bf16 %v447, %v447
  %v450 = vrot.slane %v448, 1
  %v452 = vsel %vm289, %v450, 0
  %454 = vmatprep.subr.bf16.mxu0 0
  %455 = vmatpush1.bf16.msra.mxu0 0
  %456 = vmatprep.subr.bf16.mxu0 0
  %457 = vmatpush1.bf16.msra.mxu0 0
  %458 = vmatprep.subr.bf16.mxu0 0
  %459 = vmatpush1.bf16.msra.mxu0 0
  %460 = vmatprep.subr.bf16.mxu0 0
  %461 = vmatpush1.bf16.msra.mxu0 0
  %462 = vmatprep.subr.bf16.mxu0 0
  %463 = vmatpush1.bf16.msra.mxu0 0
  %464 = vmatprep.subr.bf16.mxu0 0
  %465 = vmatpush1.bf16.msra.mxu0 %v295
  %466 = vmatprep.subr.bf16.mxu0 0
  %467 = vmatpush1.bf16.msra.mxu0 %v285
  %468 = vmatprep.subr.bf16.mxu0 0
  %469 = vmatpush1.bf16.msra.mxu0 %v284
  %470 = vmatprep.subr.bf16.mxu0 0
  %471 = vmatpush2.bf16.msra.mxu0 0
  %472 = vmatprep.subr.bf16.mxu0 0
  %473 = vmatpush2.bf16.msra.mxu0 0
  %474 = vmatprep.subr.bf16.mxu0 0
  %475 = vmatpush2.bf16.msra.mxu0 0
  %476 = vmatprep.subr.bf16.mxu0 0
  %477 = vmatpush2.bf16.msra.mxu0 0
  %478 = vmatprep.subr.bf16.mxu0 0
  %479 = vmatpush2.bf16.msra.mxu0 0
  %480 = vmatprep.subr.bf16.mxu0 0
  %481 = vmatpush2.bf16.msra.mxu0 0
  %482 = vmatprep.subr.bf16.mxu0 0
  %483 = vmatpush2.bf16.msra.mxu0 0
  %484 = vmatprep.subr.bf16.mxu0 0
  %485 = vmatpush2.bf16.msra.mxu0 0
  %486 = vmatprep.mubr.bf16.mxu0 0
  %487 = vmatmul.mubr.bf16.gmra.mxu0 %v452
  %v488 = vpop.f32.mrf.mxu0
  %v489 = vadd.f32 %v43, %v488
  %v490 = vpop.f32.mrf.mxu0
  %v491 = vpop.f32.mrf.mxu0
  %v492 = vpop.f32.mrf.mxu0
  %493 = vdwg.mxu0
  %v494 = vxor.u32 %v489, 2147483648
  %v495 = vmul.f32 %v494, 1.442695
  %v496 = vpow.pop %v495
  %v497 = vadd.f32 %v496, 1.0
  %v498 = vrcp.pop %v497
  %v499 = vmul.f32 1.0, %v498
  %501 = vrot.lane.b32.xlu0 %v489, 68
  %v502 = vpop.permute.xlu0 %501
  %v504 = vmul.f32 %v499, %v502
  %506 = vrot.lane.b32.xlu0 %v504, 40
  %v507 = vpop.permute.xlu0 %506
  %v509 = vadd.f32 %v489, %v507
  %v510 = vtanh.pop %v509
  %v511 = vsub.f32 1.0, %v499
  %513 = vrot.lane.b32.xlu0 %v510, 108
  %v514 = vpop.permute.xlu0 %513
  %v516 = vmul.f32 %v511, %v514
  %v517 = vmul.f32 %v499, %v361
  %v518 = vadd.f32 %v516, %v517
  %519 = vrot.lane.b32.xlu0 %v361, 108
  %v520 = vpop.permute.xlu0 %519
  %v522 = vsel %vm117, %v520, 0.0
  %v523 = vpack.c.bf16 %v522, %v522
  %v529 = vunpack.c.l.b16 %v25
  %v530 = vunpack.c.l.b16 %v26
  %v531 = vunpack.c.l.b16 %v27
  %v532 = vunpack.c.l.b16 %v28
  %v533 = vunpack.c.l.b16 %v29
  %v534 = vpack.c.b16 %v530, %v529
  %v535 = vpack.c.b16 %v532, %v531
  %v536 = vpack.c.b16 %v533, %v533
  %v540 = vsel %vm289, %v523, 0
  %v543 = vsel %vm293, %v536, 0
  %545 = vmatprep.subr.bf16.mxu0 0
  %546 = vmatpush1.bf16.msra.mxu0 0
  %547 = vmatprep.subr.bf16.mxu0 0
  %548 = vmatpush1.bf16.msra.mxu0 0
  %549 = vmatprep.subr.bf16.mxu0 0
  %550 = vmatpush1.bf16.msra.mxu0 0
  %551 = vmatprep.subr.bf16.mxu0 0
  %552 = vmatpush1.bf16.msra.mxu0 0
  %553 = vmatprep.subr.bf16.mxu0 0
  %554 = vmatpush1.bf16.msra.mxu0 0
  %555 = vmatprep.subr.bf16.mxu0 0
  %556 = vmatpush1.bf16.msra.mxu0 %v543
  %557 = vmatprep.subr.bf16.mxu0 0
  %558 = vmatpush1.bf16.msra.mxu0 %v535
  %559 = vmatprep.subr.bf16.mxu0 0
  %560 = vmatpush1.bf16.msra.mxu0 %v534
  %561 = vmatprep.subr.bf16.mxu0 0
  %562 = vmatpush2.bf16.msra.mxu0 0
  %563 = vmatprep.subr.bf16.mxu0 0
  %564 = vmatpush2.bf16.msra.mxu0 0
  %565 = vmatprep.subr.bf16.mxu0 0
  %566 = vmatpush2.bf16.msra.mxu0 0
  %567 = vmatprep.subr.bf16.mxu0 0
  %568 = vmatpush2.bf16.msra.mxu0 0
  %569 = vmatprep.subr.bf16.mxu0 0
  %570 = vmatpush2.bf16.msra.mxu0 0
  %571 = vmatprep.subr.bf16.mxu0 0
  %572 = vmatpush2.bf16.msra.mxu0 0
  %573 = vmatprep.subr.bf16.mxu0 0
  %574 = vmatpush2.bf16.msra.mxu0 0
  %575 = vmatprep.subr.bf16.mxu0 0
  %576 = vmatpush2.bf16.msra.mxu0 0
  %577 = vmatprep.mubr.bf16.mxu0 0
  %578 = vmatmul.mubr.bf16.gmra.mxu0 %v540
  %v579 = vpop.f32.mrf.mxu0
  %v580 = vadd.f32 %v48, %v579
  %v581 = vpop.f32.mrf.mxu0
  %v582 = vpop.f32.mrf.mxu0
  %v583 = vpop.f32.mrf.mxu0
  %584 = vdwg.mxu0
  %v585 = vxor.u32 %v580, 2147483648
  %v586 = vmul.f32 %v585, 1.442695
  %v587 = vpow.pop %v586
  %v588 = vadd.f32 %v587, 1.0
  %v589 = vrcp.pop %v588
  %v590 = vmul.f32 1.0, %v589
  %592 = vrot.lane.b32.xlu0 %v580, 68
  %v593 = vpop.permute.xlu0 %592
  %v595 = vmul.f32 %v590, %v593
  %597 = vrot.lane.b32.xlu0 %v595, 40
  %v598 = vpop.permute.xlu0 %597
  %v600 = vadd.f32 %v580, %v598
  %v601 = vtanh.pop %v600
  %v602 = vsub.f32 1.0, %v590
  %604 = vrot.lane.b32.xlu0 %v601, 108
  %v605 = vpop.permute.xlu0 %604
  %v607 = vmul.f32 %v602, %v605
  %v608 = vmul.f32 %v590, 0.0
  %v609 = vadd.f32 %v607, %v608
  %v610 = vpack.c.bf16 %v440, %v440
  %v612 = vrot.slane %v610, 2
  %613 = vrot.lane.b32.xlu0 %v612, 108
  %v614 = vpop.permute.xlu0 %613
  %v616 = vsel %vm117, %v614, 0
  %618 = vmatprep.subr.bf16.mxu0 0
  %619 = vmatpush1.bf16.msra.mxu0 0
  %620 = vmatprep.subr.bf16.mxu0 0
  %621 = vmatpush1.bf16.msra.mxu0 0
  %622 = vmatprep.subr.bf16.mxu0 0
  %623 = vmatpush1.bf16.msra.mxu0 0
  %624 = vmatprep.subr.bf16.mxu0 0
  %625 = vmatpush1.bf16.msra.mxu0 0
  %626 = vmatprep.subr.bf16.mxu0 0
  %627 = vmatpush1.bf16.msra.mxu0 0
  %628 = vmatprep.subr.bf16.mxu0 0
  %629 = vmatpush1.bf16.msra.mxu0 0
  %630 = vmatprep.subr.bf16.mxu0 0
  %631 = vmatpush1.bf16.msra.mxu0 %v123
  %632 = vmatprep.subr.bf16.mxu0 0
  %633 = vmatpush1.bf16.msra.mxu0 %v114
  %634 = vmatprep.subr.bf16.mxu0 0
  %635 = vmatpush2.bf16.msra.mxu0 0
  %636 = vmatprep.subr.bf16.mxu0 0
  %637 = vmatpush2.bf16.msra.mxu0 0
  %638 = vmatprep.subr.bf16.mxu0 0
  %639 = vmatpush2.bf16.msra.mxu0 0
  %640 = vmatprep.subr.bf16.mxu0 0
  %641 = vmatpush2.bf16.msra.mxu0 0
  %642 = vmatprep.subr.bf16.mxu0 0
  %643 = vmatpush2.bf16.msra.mxu0 0
  %644 = vmatprep.subr.bf16.mxu0 0
  %645 = vmatpush2.bf16.msra.mxu0 0
  %646 = vmatprep.subr.bf16.mxu0 0
  %647 = vmatpush2.bf16.msra.mxu0 0
  %648 = vmatprep.subr.bf16.mxu0 0
  %649 = vmatpush2.bf16.msra.mxu0 0
  %650 = vmatprep.mubr.bf16.mxu0 0
  %651 = vmatmul.mubr.bf16.gmra.mxu0 %v616
  %v652 = vpop.f32.mrf.mxu0
  %v653 = vadd.f32 %v38, %v652
  %v654 = vpop.f32.mrf.mxu0
  %v655 = vpop.f32.mrf.mxu0
  %v656 = vpop.f32.mrf.mxu0
  %657 = vdwg.mxu0
  %v659 = vrot.slane %v653, 2
  %v661 = vadd.f32 %v102, %v659
  %v662 = vxor.u32 %v661, 2147483648
  %v663 = vmul.f32 %v662, 1.442695
  %v664 = vpow.pop %v663
  %v665 = vadd.f32 %v664, 1.0
  %v666 = vrcp.pop %v665
  %v667 = vmul.f32 1.0, %v666
  %668 = vrot.lane.b32.xlu0 %v659, 88
  %v669 = vpop.permute.xlu0 %668
  %v671 = vmul.f32 %v667, %v669
  %673 = vrot.lane.b32.xlu0 %v671, 40
  %v674 = vpop.permute.xlu0 %673
  %v676 = vadd.f32 %v102, %v674
  %v677 = vtanh.pop %v676
  %v678 = vsub.f32 1.0, %v667
  %680 = vrot.lane.b32.xlu0 %v677, 108
  %v681 = vpop.permute.xlu0 %680
  %v683 = vmul.f32 %v678, %v681
  %v685 = vrot.slane %v440, 6
  %v687 = vmul.f32 %v667, %v685
  %v688 = vadd.f32 %v683, %v687
  %689 = vrot.lane.b32.xlu0 %v440, 108
  %v690 = vpop.permute.xlu0 %689
  %v693 = vrot.slane %v518, 4
  %v695 = vsel %vm117, %v690, %v693
  %v696 = vpack.c.bf16 %v695, %v695
  %v698 = vrot.slane %v696, 2
  %v700 = vsel %vm289, %v698, 0
  %702 = vmatprep.subr.bf16.mxu0 0
  %703 = vmatpush1.bf16.msra.mxu0 0
  %704 = vmatprep.subr.bf16.mxu0 0
  %705 = vmatpush1.bf16.msra.mxu0 0
  %706 = vmatprep.subr.bf16.mxu0 0
  %707 = vmatpush1.bf16.msra.mxu0 0
  %708 = vmatprep.subr.bf16.mxu0 0
  %709 = vmatpush1.bf16.msra.mxu0 0
  %710 = vmatprep.subr.bf16.mxu0 0
  %711 = vmatpush1.bf16.msra.mxu0 0
  %712 = vmatprep.subr.bf16.mxu0 0
  %713 = vmatpush1.bf16.msra.mxu0 %v295
  %714 = vmatprep.subr.bf16.mxu0 0
  %715 = vmatpush1.bf16.msra.mxu0 %v285
  %716 = vmatprep.subr.bf16.mxu0 0
  %717 = vmatpush1.bf16.msra.mxu0 %v284
  %718 = vmatprep.subr.bf16.mxu0 0
  %719 = vmatpush2.bf16.msra.mxu0 0
  %720 = vmatprep.subr.bf16.mxu0 0
  %721 = vmatpush2.bf16.msra.mxu0 0
  %722 = vmatprep.subr.bf16.mxu0 0
  %723 = vmatpush2.bf16.msra.mxu0 0
  %724 = vmatprep.subr.bf16.mxu0 0
  %725 = vmatpush2.bf16.msra.mxu0 0
  %726 = vmatprep.subr.bf16.mxu0 0
  %727 = vmatpush2.bf16.msra.mxu0 0
  %728 = vmatprep.subr.bf16.mxu0 0
  %729 = vmatpush2.bf16.msra.mxu0 0
  %730 = vmatprep.subr.bf16.mxu0 0
  %731 = vmatpush2.bf16.msra.mxu0 0
  %732 = vmatprep.subr.bf16.mxu0 0
  %733 = vmatpush2.bf16.msra.mxu0 0
  %734 = vmatprep.mubr.bf16.mxu0 0
  %735 = vmatmul.mubr.bf16.gmra.mxu0 %v700
  %v736 = vpop.f32.mrf.mxu0
  %v737 = vadd.f32 %v43, %v736
  %v738 = vpop.f32.mrf.mxu0
  %v739 = vpop.f32.mrf.mxu0
  %v740 = vpop.f32.mrf.mxu0
  %741 = vdwg.mxu0
  %v742 = vxor.u32 %v737, 2147483648
  %v743 = vmul.f32 %v742, 1.442695
  %v744 = vpow.pop %v743
  %v745 = vadd.f32 %v744, 1.0
  %v746 = vrcp.pop %v745
  %v747 = vmul.f32 1.0, %v746
  %749 = vrot.lane.b32.xlu0 %v737, 68
  %v750 = vpop.permute.xlu0 %749
  %v752 = vmul.f32 %v747, %v750
  %754 = vrot.lane.b32.xlu0 %v752, 40
  %v755 = vpop.permute.xlu0 %754
  %v757 = vadd.f32 %v737, %v755
  %v758 = vtanh.pop %v757
  %v759 = vsub.f32 1.0, %v747
  %761 = vrot.lane.b32.xlu0 %v758, 108
  %v762 = vpop.permute.xlu0 %761
  %v764 = vmul.f32 %v759, %v762
  %v765 = vmul.f32 %v747, %v518
  %v766 = vadd.f32 %v764, %v765
  %767 = vrot.lane.b32.xlu0 %v518, 108
  %v768 = vpop.permute.xlu0 %767
  %v770 = vsel %vm117, %v768, %v609
  %v771 = vpack.c.bf16 %v770, %v770
  %v773 = vsel %vm289, %v771, 0
  %775 = vmatprep.subr.bf16.mxu0 0
  %776 = vmatpush1.bf16.msra.mxu0 0
  %777 = vmatprep.subr.bf16.mxu0 0
  %778 = vmatpush1.bf16.msra.mxu0 0
  %779 = vmatprep.subr.bf16.mxu0 0
  %780 = vmatpush1.bf16.msra.mxu0 0
  %781 = vmatprep.subr.bf16.mxu0 0
  %782 = vmatpush1.bf16.msra.mxu0 0
  %783 = vmatprep.subr.bf16.mxu0 0
  %784 = vmatpush1.bf16.msra.mxu0 0
  %785 = vmatprep.subr.bf16.mxu0 0
  %786 = vmatpush1.bf16.msra.mxu0 %v543
  %787 = vmatprep.subr.bf16.mxu0 0
  %788 = vmatpush1.bf16.msra.mxu0 %v535
  %789 = vmatprep.subr.bf16.mxu0 0
  %790 = vmatpush1.bf16.msra.mxu0 %v534
  %791 = vmatprep.subr.bf16.mxu0 0
  %792 = vmatpush2.bf16.msra.mxu0 0
  %793 = vmatprep.subr.bf16.mxu0 0
  %794 = vmatpush2.bf16.msra.mxu0 0
  %795 = vmatprep.subr.bf16.mxu0 0
  %796 = vmatpush2.bf16.msra.mxu0 0
  %797 = vmatprep.subr.bf16.mxu0 0
  %798 = vmatpush2.bf16.msra.mxu0 0
  %799 = vmatprep.subr.bf16.mxu0 0
  %800 = vmatpush2.bf16.msra.mxu0 0
  %801 = vmatprep.subr.bf16.mxu0 0
  %802 = vmatpush2.bf16.msra.mxu0 0
  %803 = vmatprep.subr.bf16.mxu0 0
  %804 = vmatpush2.bf16.msra.mxu0 0
  %805 = vmatprep.subr.bf16.mxu0 0
  %806 = vmatpush2.bf16.msra.mxu0 0
  %807 = vmatprep.mubr.bf16.mxu0 0
  %808 = vmatmul.mubr.bf16.gmra.mxu0 %v773
  %v809 = vpop.f32.mrf.mxu0
  %v810 = vadd.f32 %v48, %v809
  %v811 = vpop.f32.mrf.mxu0
  %v812 = vpop.f32.mrf.mxu0
  %v813 = vpop.f32.mrf.mxu0
  %814 = vdwg.mxu0
  %v815 = vxor.u32 %v810, 2147483648
  %v816 = vmul.f32 %v815, 1.442695
  %v817 = vpow.pop %v816
  %v818 = vadd.f32 %v817, 1.0
  %v819 = vrcp.pop %v818
  %v820 = vmul.f32 1.0, %v819
  %822 = vrot.lane.b32.xlu0 %v810, 68
  %v823 = vpop.permute.xlu0 %822
  %v825 = vmul.f32 %v820, %v823
  %827 = vrot.lane.b32.xlu0 %v825, 40
  %v828 = vpop.permute.xlu0 %827
  %v830 = vadd.f32 %v810, %v828
  %v831 = vtanh.pop %v830
  %v832 = vsub.f32 1.0, %v820
  %834 = vrot.lane.b32.xlu0 %v831, 108
  %v835 = vpop.permute.xlu0 %834
  %v837 = vmul.f32 %v832, %v835
  %v838 = vmul.f32 %v820, %v609
  %v839 = vadd.f32 %v837, %v838
  %v840 = vpack.c.bf16 %v688, %v688
  %v842 = vrot.slane %v840, 3
  %843 = vrot.lane.b32.xlu0 %v842, 108
  %v844 = vpop.permute.xlu0 %843
  %v846 = vsel %vm117, %v844, 0
  %848 = vmatprep.subr.bf16.mxu0 0
  %849 = vmatpush1.bf16.msra.mxu0 0
  %850 = vmatprep.subr.bf16.mxu0 0
  %851 = vmatpush1.bf16.msra.mxu0 0
  %852 = vmatprep.subr.bf16.mxu0 0
  %853 = vmatpush1.bf16.msra.mxu0 0
  %854 = vmatprep.subr.bf16.mxu0 0
  %855 = vmatpush1.bf16.msra.mxu0 0
  %856 = vmatprep.subr.bf16.mxu0 0
  %857 = vmatpush1.bf16.msra.mxu0 0
  %858 = vmatprep.subr.bf16.mxu0 0
  %859 = vmatpush1.bf16.msra.mxu0 0
  %860 = vmatprep.subr.bf16.mxu0 0
  %861 = vmatpush1.bf16.msra.mxu0 %v123
  %862 = vmatprep.subr.bf16.mxu0 0
  %863 = vmatpush1.bf16.msra.mxu0 %v114
  %864 = vmatprep.subr.bf16.mxu0 0
  %865 = vmatpush2.bf16.msra.mxu0 0
  %866 = vmatprep.subr.bf16.mxu0 0
  %867 = vmatpush2.bf16.msra.mxu0 0
  %868 = vmatprep.subr.bf16.mxu0 0
  %869 = vmatpush2.bf16.msra.mxu0 0
  %870 = vmatprep.subr.bf16.mxu0 0
  %871 = vmatpush2.bf16.msra.mxu0 0
  %872 = vmatprep.subr.bf16.mxu0 0
  %873 = vmatpush2.bf16.msra.mxu0 0
  %874 = vmatprep.subr.bf16.mxu0 0
  %875 = vmatpush2.bf16.msra.mxu0 0
  %876 = vmatprep.subr.bf16.mxu0 0
  %877 = vmatpush2.bf16.msra.mxu0 0
  %878 = vmatprep.subr.bf16.mxu0 0
  %879 = vmatpush2.bf16.msra.mxu0 0
  %880 = vmatprep.mubr.bf16.mxu0 0
  %881 = vmatmul.mubr.bf16.gmra.mxu0 %v846
  %v882 = vpop.f32.mrf.mxu0
  %v883 = vadd.f32 %v38, %v882
  %v884 = vpop.f32.mrf.mxu0
  %v885 = vpop.f32.mrf.mxu0
  %v886 = vpop.f32.mrf.mxu0
  %887 = vdwg.mxu0
  %v888 = vadd.f32 %v105, %v883
  %v889 = vxor.u32 %v888, 2147483648
  %v890 = vmul.f32 %v889, 1.442695
  %v891 = vpow.pop %v890
  %v892 = vadd.f32 %v891, 1.0
  %v893 = vrcp.pop %v892
  %v894 = vmul.f32 1.0, %v893
  %896 = vrot.lane.b32.xlu0 %v883, 88
  %v897 = vpop.permute.xlu0 %896
  %v899 = vmul.f32 %v894, %v897
  %901 = vrot.lane.b32.xlu0 %v899, 40
  %v902 = vpop.permute.xlu0 %901
  %v904 = vadd.f32 %v105, %v902
  %v905 = vtanh.pop %v904
  %v906 = vsub.f32 1.0, %v894
  %908 = vrot.lane.b32.xlu0 %v905, 108
  %v909 = vpop.permute.xlu0 %908
  %v911 = vmul.f32 %v906, %v909
  %v913 = vrot.slane %v688, 6
  %v915 = vmul.f32 %v894, %v913
  %v916 = vadd.f32 %v911, %v915
  %917 = vrot.lane.b32.xlu0 %v688, 108
  %v918 = vpop.permute.xlu0 %917
  %v921 = vrot.slane %v766, 2
  %v923 = vsel %vm117, %v918, %v921
  %v924 = vpack.c.bf16 %v923, %v923
  %v926 = vrot.slane %v924, 3
  %v928 = vsel %vm289, %v926, 0
  %930 = vmatprep.subr.bf16.mxu0 0
  %931 = vmatpush1.bf16.msra.mxu0 0
  %932 = vmatprep.subr.bf16.mxu0 0
  %933 = vmatpush1.bf16.msra.mxu0 0
  %934 = vmatprep.subr.bf16.mxu0 0
  %935 = vmatpush1.bf16.msra.mxu0 0
  %936 = vmatprep.subr.bf16.mxu0 0
  %937 = vmatpush1.bf16.msra.mxu0 0
  %938 = vmatprep.subr.bf16.mxu0 0
  %939 = vmatpush1.bf16.msra.mxu0 0
  %940 = vmatprep.subr.bf16.mxu0 0
  %941 = vmatpush1.bf16.msra.mxu0 %v295
  %942 = vmatprep.subr.bf16.mxu0 0
  %943 = vmatpush1.bf16.msra.mxu0 %v285
  %944 = vmatprep.subr.bf16.mxu0 0
  %945 = vmatpush1.bf16.msra.mxu0 %v284
  %946 = vmatprep.subr.bf16.mxu0 0
  %947 = vmatpush2.bf16.msra.mxu0 0
  %948 = vmatprep.subr.bf16.mxu0 0
  %949 = vmatpush2.bf16.msra.mxu0 0
  %950 = vmatprep.subr.bf16.mxu0 0
  %951 = vmatpush2.bf16.msra.mxu0 0
  %952 = vmatprep.subr.bf16.mxu0 0
  %953 = vmatpush2.bf16.msra.mxu0 0
  %954 = vmatprep.subr.bf16.mxu0 0
  %955 = vmatpush2.bf16.msra.mxu0 0
  %956 = vmatprep.subr.bf16.mxu0 0
  %957 = vmatpush2.bf16.msra.mxu0 0
  %958 = vmatprep.subr.bf16.mxu0 0
  %959 = vmatpush2.bf16.msra.mxu0 0
  %960 = vmatprep.subr.bf16.mxu0 0
  %961 = vmatpush2.bf16.msra.mxu0 0
  %962 = vmatprep.mubr.bf16.mxu0 0
  %963 = vmatmul.mubr.bf16.gmra.mxu0 %v928
  %v964 = vpop.f32.mrf.mxu0
  %v965 = vadd.f32 %v43, %v964
  %v966 = vpop.f32.mrf.mxu0
  %v967 = vpop.f32.mrf.mxu0
  %v968 = vpop.f32.mrf.mxu0
  %969 = vdwg.mxu0
  %v970 = vxor.u32 %v965, 2147483648
  %v971 = vmul.f32 %v970, 1.442695
  %v972 = vpow.pop %v971
  %v973 = vadd.f32 %v972, 1.0
  %v974 = vrcp.pop %v973
  %v975 = vmul.f32 1.0, %v974
  %977 = vrot.lane.b32.xlu0 %v965, 68
  %v978 = vpop.permute.xlu0 %977
  %v980 = vmul.f32 %v975, %v978
  %982 = vrot.lane.b32.xlu0 %v980, 40
  %v983 = vpop.permute.xlu0 %982
  %v985 = vadd.f32 %v965, %v983
  %v986 = vtanh.pop %v985
  %v987 = vsub.f32 1.0, %v975
  %989 = vrot.lane.b32.xlu0 %v986, 108
  %v990 = vpop.permute.xlu0 %989
  %v992 = vmul.f32 %v987, %v990
  %v993 = vmul.f32 %v975, %v766
  %v994 = vadd.f32 %v992, %v993
  %995 = vrot.lane.b32.xlu0 %v766, 108
  %v996 = vpop.permute.xlu0 %995
  %v998 = vsel %vm117, %v996, %v839
  %v999 = vpack.c.bf16 %v998, %v998
  %v1001 = vsel %vm289, %v999, 0
  %1003 = vmatprep.subr.bf16.mxu0 0
  %1004 = vmatpush1.bf16.msra.mxu0 0
  %1005 = vmatprep.subr.bf16.mxu0 0
  %1006 = vmatpush1.bf16.msra.mxu0 0
  %1007 = vmatprep.subr.bf16.mxu0 0
  %1008 = vmatpush1.bf16.msra.mxu0 0
  %1009 = vmatprep.subr.bf16.mxu0 0
  %1010 = vmatpush1.bf16.msra.mxu0 0
  %1011 = vmatprep.subr.bf16.mxu0 0
  %1012 = vmatpush1.bf16.msra.mxu0 0
  %1013 = vmatprep.subr.bf16.mxu0 0
  %1014 = vmatpush1.bf16.msra.mxu0 %v543
  %1015 = vmatprep.subr.bf16.mxu0 0
  %1016 = vmatpush1.bf16.msra.mxu0 %v535
  %1017 = vmatprep.subr.bf16.mxu0 0
  %1018 = vmatpush1.bf16.msra.mxu0 %v534
  %1019 = vmatprep.subr.bf16.mxu0 0
  %1020 = vmatpush2.bf16.msra.mxu0 0
  %1021 = vmatprep.subr.bf16.mxu0 0
  %1022 = vmatpush2.bf16.msra.mxu0 0
  %1023 = vmatprep.subr.bf16.mxu0 0
  %1024 = vmatpush2.bf16.msra.mxu0 0
  %1025 = vmatprep.subr.bf16.mxu0 0
  %1026 = vmatpush2.bf16.msra.mxu0 0
  %1027 = vmatprep.subr.bf16.mxu0 0
  %1028 = vmatpush2.bf16.msra.mxu0 0
  %1029 = vmatprep.subr.bf16.mxu0 0
  %1030 = vmatpush2.bf16.msra.mxu0 0
  %1031 = vmatprep.subr.bf16.mxu0 0
  %1032 = vmatpush2.bf16.msra.mxu0 0
  %1033 = vmatprep.subr.bf16.mxu0 0
  %1034 = vmatpush2.bf16.msra.mxu0 0
  %1035 = vmatprep.mubr.bf16.mxu0 0
  %1036 = vmatmul.mubr.bf16.gmra.mxu0 %v1001
  %v1037 = vpop.f32.mrf.mxu0
  %v1038 = vadd.f32 %v48, %v1037
  %v1039 = vpop.f32.mrf.mxu0
  %v1040 = vpop.f32.mrf.mxu0
  %v1041 = vpop.f32.mrf.mxu0
  %1042 = vdwg.mxu0
  %v1043 = vxor.u32 %v1038, 2147483648
  %v1044 = vmul.f32 %v1043, 1.442695
  %v1045 = vpow.pop %v1044
  %v1046 = vadd.f32 %v1045, 1.0
  %v1047 = vrcp.pop %v1046
  %v1048 = vmul.f32 1.0, %v1047
  %1050 = vrot.lane.b32.xlu0 %v1038, 68
  %v1051 = vpop.permute.xlu0 %1050
  %v1053 = vmul.f32 %v1048, %v1051
  %1055 = vrot.lane.b32.xlu0 %v1053, 40
  %v1056 = vpop.permute.xlu0 %1055
  %v1058 = vadd.f32 %v1038, %v1056
  %v1059 = vtanh.pop %v1058
  %v1060 = vsub.f32 1.0, %v1048
  %1062 = vrot.lane.b32.xlu0 %v1059, 108
  %v1063 = vpop.permute.xlu0 %1062
  %v1065 = vmul.f32 %v1060, %v1063
  %v1066 = vmul.f32 %v1048, %v839
  %v1067 = vadd.f32 %v1065, %v1066
  %v1068 = vpack.c.bf16 %v916, %v916
  %1070 = vrot.lane.b32.xlu0 %v1068, 108
  %v1071 = vpop.permute.xlu0 %1070
  %v1073 = vsel %vm117, %v1071, 0
  %1075 = vmatprep.subr.bf16.mxu0 0
  %1076 = vmatpush1.bf16.msra.mxu0 0
  %1077 = vmatprep.subr.bf16.mxu0 0
  %1078 = vmatpush1.bf16.msra.mxu0 0
  %1079 = vmatprep.subr.bf16.mxu0 0
  %1080 = vmatpush1.bf16.msra.mxu0 0
  %1081 = vmatprep.subr.bf16.mxu0 0
  %1082 = vmatpush1.bf16.msra.mxu0 0
  %1083 = vmatprep.subr.bf16.mxu0 0
  %1084 = vmatpush1.bf16.msra.mxu0 0
  %1085 = vmatprep.subr.bf16.mxu0 0
  %1086 = vmatpush1.bf16.msra.mxu0 0
  %1087 = vmatprep.subr.bf16.mxu0 0
  %1088 = vmatpush1.bf16.msra.mxu0 %v123
  %1089 = vmatprep.subr.bf16.mxu0 0
  %1090 = vmatpush1.bf16.msra.mxu0 %v114
  %1091 = vmatprep.subr.bf16.mxu0 0
  %1092 = vmatpush2.bf16.msra.mxu0 0
  %1093 = vmatprep.subr.bf16.mxu0 0
  %1094 = vmatpush2.bf16.msra.mxu0 0
  %1095 = vmatprep.subr.bf16.mxu0 0
  %1096 = vmatpush2.bf16.msra.mxu0 0
  %1097 = vmatprep.subr.bf16.mxu0 0
  %1098 = vmatpush2.bf16.msra.mxu0 0
  %1099 = vmatprep.subr.bf16.mxu0 0
  %1100 = vmatpush2.bf16.msra.mxu0 0
  %1101 = vmatprep.subr.bf16.mxu0 0
  %1102 = vmatpush2.bf16.msra.mxu0 0
  %1103 = vmatprep.subr.bf16.mxu0 0
  %1104 = vmatpush2.bf16.msra.mxu0 0
  %1105 = vmatprep.subr.bf16.mxu0 0
  %1106 = vmatpush2.bf16.msra.mxu0 0
  %1107 = vmatprep.mubr.bf16.mxu0 0
  %1108 = vmatmul.mubr.bf16.gmra.mxu0 %v1073
  %v1109 = vpop.f32.mrf.mxu0
  %v1110 = vadd.f32 %v38, %v1109
  %v1111 = vpop.f32.mrf.mxu0
  %v1112 = vpop.f32.mrf.mxu0
  %v1113 = vpop.f32.mrf.mxu0
  %1114 = vdwg.mxu0
  %v1116 = vrot.slane %v1110, 6
  %v1118 = vadd.f32 %v105, %v1116
  %v1119 = vxor.u32 %v1118, 2147483648
  %v1120 = vmul.f32 %v1119, 1.442695
  %v1121 = vpow.pop %v1120
  %v1122 = vadd.f32 %v1121, 1.0
  %v1123 = vrcp.pop %v1122
  %v1124 = vmul.f32 1.0, %v1123
  %1125 = vrot.lane.b32.xlu0 %v1116, 88
  %v1126 = vpop.permute.xlu0 %1125
  %v1128 = vmul.f32 %v1124, %v1126
  %1130 = vrot.lane.b32.xlu0 %v1128, 40
  %v1131 = vpop.permute.xlu0 %1130
  %v1133 = vadd.f32 %v105, %v1131
  %v1134 = vtanh.pop %v1133
  %v1135 = vsub.f32 1.0, %v1124
  %1137 = vrot.lane.b32.xlu0 %v1134, 108
  %v1138 = vpop.permute.xlu0 %1137
  %v1140 = vmul.f32 %v1135, %v1138
  %v1142 = vrot.slane %v916, 6
  %v1144 = vmul.f32 %v1124, %v1142
  %v1145 = vadd.f32 %v1140, %v1144
  %1146 = vrot.lane.b32.xlu0 %v916, 108
  %v1147 = vpop.permute.xlu0 %1146
  %v1149 = vsel %vm117, %v1147, %v994
  %v1150 = vpack.c.bf16 %v1149, %v1149
  %v1152 = vsel %vm289, %v1150, 0
  %1154 = vmatprep.subr.bf16.mxu0 0
  %1155 = vmatpush1.bf16.msra.mxu0 0
  %1156 = vmatprep.subr.bf16.mxu0 0
  %1157 = vmatpush1.bf16.msra.mxu0 0
  %1158 = vmatprep.subr.bf16.mxu0 0
  %1159 = vmatpush1.bf16.msra.mxu0 0
  %1160 = vmatprep.subr.bf16.mxu0 0
  %1161 = vmatpush1.bf16.msra.mxu0 0
  %1162 = vmatprep.subr.bf16.mxu0 0
  %1163 = vmatpush1.bf16.msra.mxu0 0
  %1164 = vmatprep.subr.bf16.mxu0 0
  %1165 = vmatpush1.bf16.msra.mxu0 %v295
  %1166 = vmatprep.subr.bf16.mxu0 0
  %1167 = vmatpush1.bf16.msra.mxu0 %v285
  %1168 = vmatprep.subr.bf16.mxu0 0
  %1169 = vmatpush1.bf16.msra.mxu0 %v284
  %1170 = vmatprep.subr.bf16.mxu0 0
  %1171 = vmatpush2.bf16.msra.mxu0 0
  %1172 = vmatprep.subr.bf16.mxu0 0
  %1173 = vmatpush2.bf16.msra.mxu0 0
  %1174 = vmatprep.subr.bf16.mxu0 0
  %1175 = vmatpush2.bf16.msra.mxu0 0
  %1176 = vmatprep.subr.bf16.mxu0 0
  %1177 = vmatpush2.bf16.msra.mxu0 0
  %1178 = vmatprep.subr.bf16.mxu0 0
  %1179 = vmatpush2.bf16.msra.mxu0 0
  %1180 = vmatprep.subr.bf16.mxu0 0
  %1181 = vmatpush2.bf16.msra.mxu0 0
  %1182 = vmatprep.subr.bf16.mxu0 0
  %1183 = vmatpush2.bf16.msra.mxu0 0
  %1184 = vmatprep.subr.bf16.mxu0 0
  %1185 = vmatpush2.bf16.msra.mxu0 0
  %1186 = vmatprep.mubr.bf16.mxu0 0
  %1187 = vmatmul.mubr.bf16.gmra.mxu0 %v1152
  %v1188 = vpop.f32.mrf.mxu0
  %v1189 = vadd.f32 %v43, %v1188
  %v1190 = vpop.f32.mrf.mxu0
  %v1191 = vpop.f32.mrf.mxu0
  %v1192 = vpop.f32.mrf.mxu0
  %1193 = vdwg.mxu0
  %v1194 = vxor.u32 %v1189, 2147483648
  %v1195 = vmul.f32 %v1194, 1.442695
  %v1196 = vpow.pop %v1195
  %v1197 = vadd.f32 %v1196, 1.0
  %v1198 = vrcp.pop %v1197
  %v1199 = vmul.f32 1.0, %v1198
  %1201 = vrot.lane.b32.xlu0 %v1189, 68
  %v1202 = vpop.permute.xlu0 %1201
  %v1204 = vmul.f32 %v1199, %v1202
  %1206 = vrot.lane.b32.xlu0 %v1204, 40
  %v1207 = vpop.permute.xlu0 %1206
  %v1209 = vadd.f32 %v1189, %v1207
  %v1210 = vtanh.pop %v1209
  %v1211 = vsub.f32 1.0, %v1199
  %1213 = vrot.lane.b32.xlu0 %v1210, 108
  %v1214 = vpop.permute.xlu0 %1213
  %v1216 = vmul.f32 %v1211, %v1214
  %v1217 = vmul.f32 %v1199, %v994
  %v1218 = vadd.f32 %v1216, %v1217
  %1220 = vrot.lane.b32.xlu0 %v994, 108
  %v1221 = vpop.permute.xlu0 %1220
  %v1223 = vsel %vm117, %v1221, %v1067
  %v1224 = vpack.c.bf16 %v1223, %v1223
  %v1226 = vsel %vm289, %v1224, 0
  %1228 = vmatprep.subr.bf16.mxu0 0
  %1229 = vmatpush1.bf16.msra.mxu0 0
  %1230 = vmatprep.subr.bf16.mxu0 0
  %1231 = vmatpush1.bf16.msra.mxu0 0
  %1232 = vmatprep.subr.bf16.mxu0 0
  %1233 = vmatpush1.bf16.msra.mxu0 0
  %1234 = vmatprep.subr.bf16.mxu0 0
  %1235 = vmatpush1.bf16.msra.mxu0 0
  %1236 = vmatprep.subr.bf16.mxu0 0
  %1237 = vmatpush1.bf16.msra.mxu0 0
  %1238 = vmatprep.subr.bf16.mxu0 0
  %1239 = vmatpush1.bf16.msra.mxu0 %v543
  %1240 = vmatprep.subr.bf16.mxu0 0
  %1241 = vmatpush1.bf16.msra.mxu0 %v535
  %1242 = vmatprep.subr.bf16.mxu0 0
  %1243 = vmatpush1.bf16.msra.mxu0 %v534
  %1244 = vmatprep.subr.bf16.mxu0 0
  %1245 = vmatpush2.bf16.msra.mxu0 0
  %1246 = vmatprep.subr.bf16.mxu0 0
  %1247 = vmatpush2.bf16.msra.mxu0 0
  %1248 = vmatprep.subr.bf16.mxu0 0
  %1249 = vmatpush2.bf16.msra.mxu0 0
  %1250 = vmatprep.subr.bf16.mxu0 0
  %1251 = vmatpush2.bf16.msra.mxu0 0
  %1252 = vmatprep.subr.bf16.mxu0 0
  %1253 = vmatpush2.bf16.msra.mxu0 0
  %1254 = vmatprep.subr.bf16.mxu0 0
  %1255 = vmatpush2.bf16.msra.mxu0 0
  %1256 = vmatprep.subr.bf16.mxu0 0
  %1257 = vmatpush2.bf16.msra.mxu0 0
  %1258 = vmatprep.subr.bf16.mxu0 0
  %1259 = vmatpush2.bf16.msra.mxu0 0
  %1260 = vmatprep.mubr.bf16.mxu0 0
  %1261 = vmatmul.mubr.bf16.gmra.mxu0 %v1226
  %v1262 = vpop.f32.mrf.mxu0
  %v1263 = vadd.f32 %v48, %v1262
  %v1264 = vpop.f32.mrf.mxu0
  %v1265 = vpop.f32.mrf.mxu0
  %v1266 = vpop.f32.mrf.mxu0
  %1267 = vdwg.mxu0
  %v1268 = vxor.u32 %v1263, 2147483648
  %v1269 = vmul.f32 %v1268, 1.442695
  %v1270 = vpow.pop %v1269
  %v1271 = vadd.f32 %v1270, 1.0
  %v1272 = vrcp.pop %v1271
  %v1273 = vmul.f32 1.0, %v1272
  %1275 = vrot.lane.b32.xlu0 %v1263, 68
  %v1276 = vpop.permute.xlu0 %1275
  %v1278 = vmul.f32 %v1273, %v1276
  %1280 = vrot.lane.b32.xlu0 %v1278, 40
  %v1281 = vpop.permute.xlu0 %1280
  %v1283 = vadd.f32 %v1263, %v1281
  %v1284 = vtanh.pop %v1283
  %v1285 = vsub.f32 1.0, %v1273
  %1287 = vrot.lane.b32.xlu0 %v1284, 108
  %v1288 = vpop.permute.xlu0 %1287
  %v1290 = vmul.f32 %v1285, %v1288
  %v1291 = vmul.f32 %v1273, %v1067
  %v1292 = vadd.f32 %v1290, %v1291
  %v1293 = vpack.c.bf16 %v1145, %v1145
  %v1295 = vrot.slane %v1293, 1
  %1296 = vrot.lane.b32.xlu0 %v1295, 108
  %v1297 = vpop.permute.xlu0 %1296
  %v1299 = vsel %vm117, %v1297, 0
  %1301 = vmatprep.subr.bf16.mxu0 0
  %1302 = vmatpush1.bf16.msra.mxu0 0
  %1303 = vmatprep.subr.bf16.mxu0 0
  %1304 = vmatpush1.bf16.msra.mxu0 0
  %1305 = vmatprep.subr.bf16.mxu0 0
  %1306 = vmatpush1.bf16.msra.mxu0 0
  %1307 = vmatprep.subr.bf16.mxu0 0
  %1308 = vmatpush1.bf16.msra.mxu0 0
  %1309 = vmatprep.subr.bf16.mxu0 0
  %1310 = vmatpush1.bf16.msra.mxu0 0
  %1311 = vmatprep.subr.bf16.mxu0 0
  %1312 = vmatpush1.bf16.msra.mxu0 0
  %1313 = vmatprep.subr.bf16.mxu0 0
  %1314 = vmatpush1.bf16.msra.mxu0 %v123
  %1315 = vmatprep.subr.bf16.mxu0 0
  %1316 = vmatpush1.bf16.msra.mxu0 %v114
  %1317 = vmatprep.subr.bf16.mxu0 0
  %1318 = vmatpush2.bf16.msra.mxu0 0
  %1319 = vmatprep.subr.bf16.mxu0 0
  %1320 = vmatpush2.bf16.msra.mxu0 0
  %1321 = vmatprep.subr.bf16.mxu0 0
  %1322 = vmatpush2.bf16.msra.mxu0 0
  %1323 = vmatprep.subr.bf16.mxu0 0
  %1324 = vmatpush2.bf16.msra.mxu0 0
  %1325 = vmatprep.subr.bf16.mxu0 0
  %1326 = vmatpush2.bf16.msra.mxu0 0
  %1327 = vmatprep.subr.bf16.mxu0 0
  %1328 = vmatpush2.bf16.msra.mxu0 0
  %1329 = vmatprep.subr.bf16.mxu0 0
  %1330 = vmatpush2.bf16.msra.mxu0 0
  %1331 = vmatprep.subr.bf16.mxu0 0
  %1332 = vmatpush2.bf16.msra.mxu0 0
  %1333 = vmatprep.mubr.bf16.mxu0 0
  %1334 = vmatmul.mubr.bf16.gmra.mxu0 %v1299
  %v1335 = vpop.f32.mrf.mxu0
  %v1336 = vadd.f32 %v38, %v1335
  %v1337 = vpop.f32.mrf.mxu0
  %v1338 = vpop.f32.mrf.mxu0
  %v1339 = vpop.f32.mrf.mxu0
  %1340 = vdwg.mxu0
  %v1342 = vrot.slane %v1336, 4
  %v1344 = vadd.f32 %v105, %v1342
  %v1345 = vxor.u32 %v1344, 2147483648
  %v1346 = vmul.f32 %v1345, 1.442695
  %v1347 = vpow.pop %v1346
  %v1348 = vadd.f32 %v1347, 1.0
  %v1349 = vrcp.pop %v1348
  %v1350 = vmul.f32 1.0, %v1349
  %1351 = vrot.lane.b32.xlu0 %v1342, 88
  %v1352 = vpop.permute.xlu0 %1351
  %v1354 = vmul.f32 %v1350, %v1352
  %1356 = vrot.lane.b32.xlu0 %v1354, 40
  %v1357 = vpop.permute.xlu0 %1356
  %v1359 = vadd.f32 %v105, %v1357
  %v1360 = vtanh.pop %v1359
  %v1361 = vsub.f32 1.0, %v1350
  %1363 = vrot.lane.b32.xlu0 %v1360, 108
  %v1364 = vpop.permute.xlu0 %1363
  %v1366 = vmul.f32 %v1361, %v1364
  %v1368 = vrot.slane %v1145, 6
  %v1370 = vmul.f32 %v1350, %v1368
  %v1371 = vadd.f32 %v1366, %v1370
  %1372 = vrot.lane.b32.xlu0 %v1145, 108
  %v1373 = vpop.permute.xlu0 %1372
  %v1376 = vrot.slane %v1218, 6
  %v1378 = vsel %vm117, %v1373, %v1376
  %v1379 = vpack.c.bf16 %v1378, %v1378
  %v1381 = vrot.slane %v1379, 1
  %v1383 = vsel %vm289, %v1381, 0
  %1385 = vmatprep.subr.bf16.mxu0 0
  %1386 = vmatpush1.bf16.msra.mxu0 0
  %1387 = vmatprep.subr.bf16.mxu0 0
  %1388 = vmatpush1.bf16.msra.mxu0 0
  %1389 = vmatprep.subr.bf16.mxu0 0
  %1390 = vmatpush1.bf16.msra.mxu0 0
  %1391 = vmatprep.subr.bf16.mxu0 0
  %1392 = vmatpush1.bf16.msra.mxu0 0
  %1393 = vmatprep.subr.bf16.mxu0 0
  %1394 = vmatpush1.bf16.msra.mxu0 0
  %1395 = vmatprep.subr.bf16.mxu0 0
  %1396 = vmatpush1.bf16.msra.mxu0 %v295
  %1397 = vmatprep.subr.bf16.mxu0 0
  %1398 = vmatpush1.bf16.msra.mxu0 %v285
  %1399 = vmatprep.subr.bf16.mxu0 0
  %1400 = vmatpush1.bf16.msra.mxu0 %v284
  %1401 = vmatprep.subr.bf16.mxu0 0
  %1402 = vmatpush2.bf16.msra.mxu0 0
  %1403 = vmatprep.subr.bf16.mxu0 0
  %1404 = vmatpush2.bf16.msra.mxu0 0
  %1405 = vmatprep.subr.bf16.mxu0 0
  %1406 = vmatpush2.bf16.msra.mxu0 0
  %1407 = vmatprep.subr.bf16.mxu0 0
  %1408 = vmatpush2.bf16.msra.mxu0 0
  %1409 = vmatprep.subr.bf16.mxu0 0
  %1410 = vmatpush2.bf16.msra.mxu0 0
  %1411 = vmatprep.subr.bf16.mxu0 0
  %1412 = vmatpush2.bf16.msra.mxu0 0
  %1413 = vmatprep.subr.bf16.mxu0 0
  %1414 = vmatpush2.bf16.msra.mxu0 0
  %1415 = vmatprep.subr.bf16.mxu0 0
  %1416 = vmatpush2.bf16.msra.mxu0 0
  %1417 = vmatprep.mubr.bf16.mxu0 0
  %1418 = vmatmul.mubr.bf16.gmra.mxu0 %v1383
  %v1419 = vpop.f32.mrf.mxu0
  %v1420 = vadd.f32 %v43, %v1419
  %v1421 = vpop.f32.mrf.mxu0
  %v1422 = vpop.f32.mrf.mxu0
  %v1423 = vpop.f32.mrf.mxu0
  %1424 = vdwg.mxu0
  %v1425 = vxor.u32 %v1420, 2147483648
  %v1426 = vmul.f32 %v1425, 1.442695
  %v1427 = vpow.pop %v1426
  %v1428 = vadd.f32 %v1427, 1.0
  %v1429 = vrcp.pop %v1428
  %v1430 = vmul.f32 1.0, %v1429
  %1432 = vrot.lane.b32.xlu0 %v1420, 68
  %v1433 = vpop.permute.xlu0 %1432
  %v1435 = vmul.f32 %v1430, %v1433
  %1437 = vrot.lane.b32.xlu0 %v1435, 40
  %v1438 = vpop.permute.xlu0 %1437
  %v1440 = vadd.f32 %v1420, %v1438
  %v1441 = vtanh.pop %v1440
  %v1442 = vsub.f32 1.0, %v1430
  %1444 = vrot.lane.b32.xlu0 %v1441, 108
  %v1445 = vpop.permute.xlu0 %1444
  %v1447 = vmul.f32 %v1442, %v1445
  %v1448 = vmul.f32 %v1430, %v1218
  %v1449 = vadd.f32 %v1447, %v1448
  %1450 = vrot.lane.b32.xlu0 %v1218, 108
  %v1451 = vpop.permute.xlu0 %1450
  %v1453 = vsel %vm117, %v1451, %v1292
  %v1454 = vpack.c.bf16 %v1453, %v1453
  %v1456 = vsel %vm289, %v1454, 0
  %1458 = vmatprep.subr.bf16.mxu0 0
  %1459 = vmatpush1.bf16.msra.mxu0 0
  %1460 = vmatprep.subr.bf16.mxu0 0
  %1461 = vmatpush1.bf16.msra.mxu0 0
  %1462 = vmatprep.subr.bf16.mxu0 0
  %1463 = vmatpush1.bf16.msra.mxu0 0
  %1464 = vmatprep.subr.bf16.mxu0 0
  %1465 = vmatpush1.bf16.msra.mxu0 0
  %1466 = vmatprep.subr.bf16.mxu0 0
  %1467 = vmatpush1.bf16.msra.mxu0 0
  %1468 = vmatprep.subr.bf16.mxu0 0
  %1469 = vmatpush1.bf16.msra.mxu0 %v543
  %1470 = vmatprep.subr.bf16.mxu0 0
  %1471 = vmatpush1.bf16.msra.mxu0 %v535
  %1472 = vmatprep.subr.bf16.mxu0 0
  %1473 = vmatpush1.bf16.msra.mxu0 %v534
  %1474 = vmatprep.subr.bf16.mxu0 0
  %1475 = vmatpush2.bf16.msra.mxu0 0
  %1476 = vmatprep.subr.bf16.mxu0 0
  %1477 = vmatpush2.bf16.msra.mxu0 0
  %1478 = vmatprep.subr.bf16.mxu0 0
  %1479 = vmatpush2.bf16.msra.mxu0 0
  %1480 = vmatprep.subr.bf16.mxu0 0
  %1481 = vmatpush2.bf16.msra.mxu0 0
  %1482 = vmatprep.subr.bf16.mxu0 0
  %1483 = vmatpush2.bf16.msra.mxu0 0
  %1484 = vmatprep.subr.bf16.mxu0 0
  %1485 = vmatpush2.bf16.msra.mxu0 0
  %1486 = vmatprep.subr.bf16.mxu0 0
  %1487 = vmatpush2.bf16.msra.mxu0 0
  %1488 = vmatprep.subr.bf16.mxu0 0
  %1489 = vmatpush2.bf16.msra.mxu0 0
  %1490 = vmatprep.mubr.bf16.mxu0 0
  %1491 = vmatmul.mubr.bf16.gmra.mxu0 %v1456
  %v1492 = vpop.f32.mrf.mxu0
  %v1493 = vadd.f32 %v48, %v1492
  %v1494 = vpop.f32.mrf.mxu0
  %v1495 = vpop.f32.mrf.mxu0
  %v1496 = vpop.f32.mrf.mxu0
  %1497 = vdwg.mxu0
  %v1498 = vxor.u32 %v1493, 2147483648
  %v1499 = vmul.f32 %v1498, 1.442695
  %v1500 = vpow.pop %v1499
  %v1501 = vadd.f32 %v1500, 1.0
  %v1502 = vrcp.pop %v1501
  %v1503 = vmul.f32 1.0, %v1502
  %1505 = vrot.lane.b32.xlu0 %v1493, 68
  %v1506 = vpop.permute.xlu0 %1505
  %v1508 = vmul.f32 %v1503, %v1506
  %1510 = vrot.lane.b32.xlu0 %v1508, 40
  %v1511 = vpop.permute.xlu0 %1510
  %v1513 = vadd.f32 %v1493, %v1511
  %v1514 = vtanh.pop %v1513
  %v1515 = vsub.f32 1.0, %v1503
  %1517 = vrot.lane.b32.xlu0 %v1514, 108
  %v1518 = vpop.permute.xlu0 %1517
  %v1520 = vmul.f32 %v1515, %v1518
  %v1521 = vmul.f32 %v1503, %v1292
  %v1522 = vadd.f32 %v1520, %v1521
  %v1523 = vpack.c.bf16 %v1371, %v1371
  %v1525 = vrot.slane %v1523, 2
  %1526 = vrot.lane.b32.xlu0 %v1525, 108
  %v1527 = vpop.permute.xlu0 %1526
  %v1529 = vsel %vm117, %v1527, 0
  %1531 = vmatprep.subr.bf16.mxu0 0
  %1532 = vmatpush1.bf16.msra.mxu0 0
  %1533 = vmatprep.subr.bf16.mxu0 0
  %1534 = vmatpush1.bf16.msra.mxu0 0
  %1535 = vmatprep.subr.bf16.mxu0 0
  %1536 = vmatpush1.bf16.msra.mxu0 0
  %1537 = vmatprep.subr.bf16.mxu0 0
  %1538 = vmatpush1.bf16.msra.mxu0 0
  %1539 = vmatprep.subr.bf16.mxu0 0
  %1540 = vmatpush1.bf16.msra.mxu0 0
  %1541 = vmatprep.subr.bf16.mxu0 0
  %1542 = vmatpush1.bf16.msra.mxu0 0
  %1543 = vmatprep.subr.bf16.mxu0 0
  %1544 = vmatpush1.bf16.msra.mxu0 %v123
  %1545 = vmatprep.subr.bf16.mxu0 0
  %1546 = vmatpush1.bf16.msra.mxu0 %v114
  %1547 = vmatprep.subr.bf16.mxu0 0
  %1548 = vmatpush2.bf16.msra.mxu0 0
  %1549 = vmatprep.subr.bf16.mxu0 0
  %1550 = vmatpush2.bf16.msra.mxu0 0
  %1551 = vmatprep.subr.bf16.mxu0 0
  %1552 = vmatpush2.bf16.msra.mxu0 0
  %1553 = vmatprep.subr.bf16.mxu0 0
  %1554 = vmatpush2.bf16.msra.mxu0 0
  %1555 = vmatprep.subr.bf16.mxu0 0
  %1556 = vmatpush2.bf16.msra.mxu0 0
  %1557 = vmatprep.subr.bf16.mxu0 0
  %1558 = vmatpush2.bf16.msra.mxu0 0
  %1559 = vmatprep.subr.bf16.mxu0 0
  %1560 = vmatpush2.bf16.msra.mxu0 0
  %1561 = vmatprep.subr.bf16.mxu0 0
  %1562 = vmatpush2.bf16.msra.mxu0 0
  %1563 = vmatprep.mubr.bf16.mxu0 0
  %1564 = vmatmul.mubr.bf16.gmra.mxu0 %v1529
  %v1565 = vpop.f32.mrf.mxu0
  %v1566 = vadd.f32 %v38, %v1565
  %v1567 = vpop.f32.mrf.mxu0
  %v1568 = vpop.f32.mrf.mxu0
  %v1569 = vpop.f32.mrf.mxu0
  %1570 = vdwg.mxu0
  %v1572 = vrot.slane %v1566, 2
  %v1574 = vadd.f32 %v105, %v1572
  %v1575 = vxor.u32 %v1574, 2147483648
  %v1576 = vmul.f32 %v1575, 1.442695
  %v1577 = vpow.pop %v1576
  %v1578 = vadd.f32 %v1577, 1.0
  %v1579 = vrcp.pop %v1578
  %v1580 = vmul.f32 1.0, %v1579
  %1581 = vrot.lane.b32.xlu0 %v1572, 88
  %v1582 = vpop.permute.xlu0 %1581
  %v1584 = vmul.f32 %v1580, %v1582
  %1586 = vrot.lane.b32.xlu0 %v1584, 40
  %v1587 = vpop.permute.xlu0 %1586
  %v1589 = vadd.f32 %v105, %v1587
  %v1590 = vtanh.pop %v1589
  %v1591 = vsub.f32 1.0, %v1580
  %1593 = vrot.lane.b32.xlu0 %v1590, 108
  %v1594 = vpop.permute.xlu0 %1593
  %v1596 = vmul.f32 %v1591, %v1594
  %v1598 = vrot.slane %v1371, 6
  %v1600 = vmul.f32 %v1580, %v1598
  %v1601 = vadd.f32 %v1596, %v1600
  %1602 = vrot.lane.b32.xlu0 %v1371, 108
  %v1603 = vpop.permute.xlu0 %1602
  %v1606 = vrot.slane %v1449, 4
  %v1608 = vsel %vm117, %v1603, %v1606
  %v1609 = vpack.c.bf16 %v1608, %v1608
  %v1611 = vrot.slane %v1609, 2
  %v1613 = vsel %vm289, %v1611, 0
  %1615 = vmatprep.subr.bf16.mxu0 0
  %1616 = vmatpush1.bf16.msra.mxu0 0
  %1617 = vmatprep.subr.bf16.mxu0 0
  %1618 = vmatpush1.bf16.msra.mxu0 0
  %1619 = vmatprep.subr.bf16.mxu0 0
  %1620 = vmatpush1.bf16.msra.mxu0 0
  %1621 = vmatprep.subr.bf16.mxu0 0
  %1622 = vmatpush1.bf16.msra.mxu0 0
  %1623 = vmatprep.subr.bf16.mxu0 0
  %1624 = vmatpush1.bf16.msra.mxu0 0
  %1625 = vmatprep.subr.bf16.mxu0 0
  %1626 = vmatpush1.bf16.msra.mxu0 %v295
  %1627 = vmatprep.subr.bf16.mxu0 0
  %1628 = vmatpush1.bf16.msra.mxu0 %v285
  %1629 = vmatprep.subr.bf16.mxu0 0
  %1630 = vmatpush1.bf16.msra.mxu0 %v284
  %1631 = vmatprep.subr.bf16.mxu0 0
  %1632 = vmatpush2.bf16.msra.mxu0 0
  %1633 = vmatprep.subr.bf16.mxu0 0
  %1634 = vmatpush2.bf16.msra.mxu0 0
  %1635 = vmatprep.subr.bf16.mxu0 0
  %1636 = vmatpush2.bf16.msra.mxu0 0
  %1637 = vmatprep.subr.bf16.mxu0 0
  %1638 = vmatpush2.bf16.msra.mxu0 0
  %1639 = vmatprep.subr.bf16.mxu0 0
  %1640 = vmatpush2.bf16.msra.mxu0 0
  %1641 = vmatprep.subr.bf16.mxu0 0
  %1642 = vmatpush2.bf16.msra.mxu0 0
  %1643 = vmatprep.subr.bf16.mxu0 0
  %1644 = vmatpush2.bf16.msra.mxu0 0
  %1645 = vmatprep.subr.bf16.mxu0 0
  %1646 = vmatpush2.bf16.msra.mxu0 0
  %1647 = vmatprep.mubr.bf16.mxu0 0
  %1648 = vmatmul.mubr.bf16.gmra.mxu0 %v1613
  %v1649 = vpop.f32.mrf.mxu0
  %v1650 = vadd.f32 %v43, %v1649
  %v1651 = vpop.f32.mrf.mxu0
  %v1652 = vpop.f32.mrf.mxu0
  %v1653 = vpop.f32.mrf.mxu0
  %1654 = vdwg.mxu0
  %v1655 = vxor.u32 %v1650, 2147483648
  %v1656 = vmul.f32 %v1655, 1.442695
  %v1657 = vpow.pop %v1656
  %v1658 = vadd.f32 %v1657, 1.0
  %v1659 = vrcp.pop %v1658
  %v1660 = vmul.f32 1.0, %v1659
  %1662 = vrot.lane.b32.xlu0 %v1650, 68
  %v1663 = vpop.permute.xlu0 %1662
  %v1665 = vmul.f32 %v1660, %v1663
  %1667 = vrot.lane.b32.xlu0 %v1665, 40
  %v1668 = vpop.permute.xlu0 %1667
  %v1670 = vadd.f32 %v1650, %v1668
  %v1671 = vtanh.pop %v1670
  %v1672 = vsub.f32 1.0, %v1660
  %1674 = vrot.lane.b32.xlu0 %v1671, 108
  %v1675 = vpop.permute.xlu0 %1674
  %v1677 = vmul.f32 %v1672, %v1675
  %v1678 = vmul.f32 %v1660, %v1449
  %v1679 = vadd.f32 %v1677, %v1678
  %1680 = vrot.lane.b32.xlu0 %v1449, 108
  %v1681 = vpop.permute.xlu0 %1680
  %v1683 = vsel %vm117, %v1681, %v1522
  %v1684 = vpack.c.bf16 %v1683, %v1683
  %v1686 = vsel %vm289, %v1684, 0
  %1688 = vmatprep.subr.bf16.mxu0 0
  %1689 = vmatpush1.bf16.msra.mxu0 0
  %1690 = vmatprep.subr.bf16.mxu0 0
  %1691 = vmatpush1.bf16.msra.mxu0 0
  %1692 = vmatprep.subr.bf16.mxu0 0
  %1693 = vmatpush1.bf16.msra.mxu0 0
  %1694 = vmatprep.subr.bf16.mxu0 0
  %1695 = vmatpush1.bf16.msra.mxu0 0
  %1696 = vmatprep.subr.bf16.mxu0 0
  %1697 = vmatpush1.bf16.msra.mxu0 0
  %1698 = vmatprep.subr.bf16.mxu0 0
  %1699 = vmatpush1.bf16.msra.mxu0 %v543
  %1700 = vmatprep.subr.bf16.mxu0 0
  %1701 = vmatpush1.bf16.msra.mxu0 %v535
  %1702 = vmatprep.subr.bf16.mxu0 0
  %1703 = vmatpush1.bf16.msra.mxu0 %v534
  %1704 = vmatprep.subr.bf16.mxu0 0
  %1705 = vmatpush2.bf16.msra.mxu0 0
  %1706 = vmatprep.subr.bf16.mxu0 0
  %1707 = vmatpush2.bf16.msra.mxu0 0
  %1708 = vmatprep.subr.bf16.mxu0 0
  %1709 = vmatpush2.bf16.msra.mxu0 0
  %1710 = vmatprep.subr.bf16.mxu0 0
  %1711 = vmatpush2.bf16.msra.mxu0 0
  %1712 = vmatprep.subr.bf16.mxu0 0
  %1713 = vmatpush2.bf16.msra.mxu0 0
  %1714 = vmatprep.subr.bf16.mxu0 0
  %1715 = vmatpush2.bf16.msra.mxu0 0
  %1716 = vmatprep.subr.bf16.mxu0 0
  %1717 = vmatpush2.bf16.msra.mxu0 0
  %1718 = vmatprep.subr.bf16.mxu0 0
  %1719 = vmatpush2.bf16.msra.mxu0 0
  %1720 = vmatprep.mubr.bf16.mxu0 0
  %1721 = vmatmul.mubr.bf16.gmra.mxu0 %v1686
  %v1722 = vpop.f32.mrf.mxu0
  %v1723 = vadd.f32 %v48, %v1722
  %v1724 = vpop.f32.mrf.mxu0
  %v1725 = vpop.f32.mrf.mxu0
  %v1726 = vpop.f32.mrf.mxu0
  %1727 = vdwg.mxu0
  %v1728 = vxor.u32 %v1723, 2147483648
  %v1729 = vmul.f32 %v1728, 1.442695
  %v1730 = vpow.pop %v1729
  %v1731 = vadd.f32 %v1730, 1.0
  %v1732 = vrcp.pop %v1731
  %v1733 = vmul.f32 1.0, %v1732
  %1735 = vrot.lane.b32.xlu0 %v1723, 68
  %v1736 = vpop.permute.xlu0 %1735
  %v1738 = vmul.f32 %v1733, %v1736
  %1740 = vrot.lane.b32.xlu0 %v1738, 40
  %v1741 = vpop.permute.xlu0 %1740
  %v1743 = vadd.f32 %v1723, %v1741
  %v1744 = vtanh.pop %v1743
  %v1745 = vsub.f32 1.0, %v1733
  %1747 = vrot.lane.b32.xlu0 %v1744, 108
  %v1748 = vpop.permute.xlu0 %1747
  %v1750 = vmul.f32 %v1745, %v1748
  %v1751 = vmul.f32 %v1733, %v1522
  %v1752 = vadd.f32 %v1750, %v1751
  %1754 = vrot.lane.b32.xlu0 %v1601, 108
  %v1755 = vpop.permute.xlu0 %1754
  %v1758 = vrot.slane %v1679, 2
  %v1760 = vsel %vm117, %v1755, %v1758
  %v1761 = vpack.c.bf16 %v1760, %v1760
  %v1763 = vrot.slane %v1761, 3
  %v1765 = vsel %vm289, %v1763, 0
  %1767 = vmatprep.subr.bf16.mxu0 0
  %1768 = vmatpush1.bf16.msra.mxu0 0
  %1769 = vmatprep.subr.bf16.mxu0 0
  %1770 = vmatpush1.bf16.msra.mxu0 0
  %1771 = vmatprep.subr.bf16.mxu0 0
  %1772 = vmatpush1.bf16.msra.mxu0 0
  %1773 = vmatprep.subr.bf16.mxu0 0
  %1774 = vmatpush1.bf16.msra.mxu0 0
  %1775 = vmatprep.subr.bf16.mxu0 0
  %1776 = vmatpush1.bf16.msra.mxu0 0
  %1777 = vmatprep.subr.bf16.mxu0 0
  %1778 = vmatpush1.bf16.msra.mxu0 %v295
  %1779 = vmatprep.subr.bf16.mxu0 0
  %1780 = vmatpush1.bf16.msra.mxu0 %v285
  %1781 = vmatprep.subr.bf16.mxu0 0
  %1782 = vmatpush1.bf16.msra.mxu0 %v284
  %1783 = vmatprep.subr.bf16.mxu0 0
  %1784 = vmatpush2.bf16.msra.mxu0 0
  %1785 = vmatprep.subr.bf16.mxu0 0
  %1786 = vmatpush2.bf16.msra.mxu0 0
  %1787 = vmatprep.subr.bf16.mxu0 0
  %1788 = vmatpush2.bf16.msra.mxu0 0
  %1789 = vmatprep.subr.bf16.mxu0 0
  %1790 = vmatpush2.bf16.msra.mxu0 0
  %1791 = vmatprep.subr.bf16.mxu0 0
  %1792 = vmatpush2.bf16.msra.mxu0 0
  %1793 = vmatprep.subr.bf16.mxu0 0
  %1794 = vmatpush2.bf16.msra.mxu0 0
  %1795 = vmatprep.subr.bf16.mxu0 0
  %1796 = vmatpush2.bf16.msra.mxu0 0
  %1797 = vmatprep.subr.bf16.mxu0 0
  %1798 = vmatpush2.bf16.msra.mxu0 0
  %1799 = vmatprep.mubr.bf16.mxu0 0
  %1800 = vmatmul.mubr.bf16.gmra.mxu0 %v1765
  %v1801 = vpop.f32.mrf.mxu0
  %v1802 = vadd.f32 %v43, %v1801
  %v1803 = vpop.f32.mrf.mxu0
  %v1804 = vpop.f32.mrf.mxu0
  %v1805 = vpop.f32.mrf.mxu0
  %1806 = vdwg.mxu0
  %v1807 = vxor.u32 %v1802, 2147483648
  %v1808 = vmul.f32 %v1807, 1.442695
  %v1809 = vpow.pop %v1808
  %v1810 = vadd.f32 %v1809, 1.0
  %v1811 = vrcp.pop %v1810
  %v1812 = vmul.f32 1.0, %v1811
  %1814 = vrot.lane.b32.xlu0 %v1802, 68
  %v1815 = vpop.permute.xlu0 %1814
  %v1817 = vmul.f32 %v1812, %v1815
  %1819 = vrot.lane.b32.xlu0 %v1817, 40
  %v1820 = vpop.permute.xlu0 %1819
  %v1822 = vadd.f32 %v1802, %v1820
  %v1823 = vtanh.pop %v1822
  %v1824 = vsub.f32 1.0, %v1812
  %1826 = vrot.lane.b32.xlu0 %v1823, 108
  %v1827 = vpop.permute.xlu0 %1826
  %v1829 = vmul.f32 %v1824, %v1827
  %v1830 = vmul.f32 %v1812, %v1679
  %v1831 = vadd.f32 %v1829, %v1830
  %1832 = vrot.lane.b32.xlu0 %v1679, 108
  %v1833 = vpop.permute.xlu0 %1832
  %v1835 = vsel %vm117, %v1833, %v1752
  %v1836 = vpack.c.bf16 %v1835, %v1835
  %v1838 = vsel %vm289, %v1836, 0
  %1840 = vmatprep.subr.bf16.mxu0 0
  %1841 = vmatpush1.bf16.msra.mxu0 0
  %1842 = vmatprep.subr.bf16.mxu0 0
  %1843 = vmatpush1.bf16.msra.mxu0 0
  %1844 = vmatprep.subr.bf16.mxu0 0
  %1845 = vmatpush1.bf16.msra.mxu0 0
  %1846 = vmatprep.subr.bf16.mxu0 0
  %1847 = vmatpush1.bf16.msra.mxu0 0
  %1848 = vmatprep.subr.bf16.mxu0 0
  %1849 = vmatpush1.bf16.msra.mxu0 0
  %1850 = vmatprep.subr.bf16.mxu0 0
  %1851 = vmatpush1.bf16.msra.mxu0 %v543
  %1852 = vmatprep.subr.bf16.mxu0 0
  %1853 = vmatpush1.bf16.msra.mxu0 %v535
  %1854 = vmatprep.subr.bf16.mxu0 0
  %1855 = vmatpush1.bf16.msra.mxu0 %v534
  %1856 = vmatprep.subr.bf16.mxu0 0
  %1857 = vmatpush2.bf16.msra.mxu0 0
  %1858 = vmatprep.subr.bf16.mxu0 0
  %1859 = vmatpush2.bf16.msra.mxu0 0
  %1860 = vmatprep.subr.bf16.mxu0 0
  %1861 = vmatpush2.bf16.msra.mxu0 0
  %1862 = vmatprep.subr.bf16.mxu0 0
  %1863 = vmatpush2.bf16.msra.mxu0 0
  %1864 = vmatprep.subr.bf16.mxu0 0
  %1865 = vmatpush2.bf16.msra.mxu0 0
  %1866 = vmatprep.subr.bf16.mxu0 0
  %1867 = vmatpush2.bf16.msra.mxu0 0
  %1868 = vmatprep.subr.bf16.mxu0 0
  %1869 = vmatpush2.bf16.msra.mxu0 0
  %1870 = vmatprep.subr.bf16.mxu0 0
  %1871 = vmatpush2.bf16.msra.mxu0 0
  %1872 = vmatprep.mubr.bf16.mxu0 0
  %1873 = vmatmul.mubr.bf16.gmra.mxu0 %v1838
  %v1874 = vpop.f32.mrf.mxu0
  %v1875 = vadd.f32 %v48, %v1874
  %v1876 = vpop.f32.mrf.mxu0
  %v1877 = vpop.f32.mrf.mxu0
  %v1878 = vpop.f32.mrf.mxu0
  %1879 = vdwg.mxu0
  %v1880 = vxor.u32 %v1875, 2147483648
  %v1881 = vmul.f32 %v1880, 1.442695
  %v1882 = vpow.pop %v1881
  %v1883 = vadd.f32 %v1882, 1.0
  %v1884 = vrcp.pop %v1883
  %v1885 = vmul.f32 1.0, %v1884
  %1887 = vrot.lane.b32.xlu0 %v1875, 68
  %v1888 = vpop.permute.xlu0 %1887
  %v1890 = vmul.f32 %v1885, %v1888
  %1892 = vrot.lane.b32.xlu0 %v1890, 40
  %v1893 = vpop.permute.xlu0 %1892
  %v1895 = vadd.f32 %v1875, %v1893
  %v1896 = vtanh.pop %v1895
  %v1897 = vsub.f32 1.0, %v1885
  %1899 = vrot.lane.b32.xlu0 %v1896, 108
  %v1900 = vpop.permute.xlu0 %1899
  %v1902 = vmul.f32 %v1897, %v1900
  %v1903 = vmul.f32 %v1885, %v1752
  %v1904 = vadd.f32 %v1902, %v1903
  %1906 = vrot.lane.b32.xlu0 %v1831, 108
  %v1907 = vpop.permute.xlu0 %1906
  %v1909 = vsel %vm117, %v1907, %v1904
  %v1910 = vpack.c.bf16 %v1909, %v1909
  %v1912 = vsel %vm289, %v1910, 0
  %1914 = vmatprep.subr.bf16.mxu0 0
  %1915 = vmatpush1.bf16.msra.mxu0 0
  %1916 = vmatprep.subr.bf16.mxu0 0
  %1917 = vmatpush1.bf16.msra.mxu0 0
  %1918 = vmatprep.subr.bf16.mxu0 0
  %1919 = vmatpush1.bf16.msra.mxu0 0
  %1920 = vmatprep.subr.bf16.mxu0 0
  %1921 = vmatpush1.bf16.msra.mxu0 0
  %1922 = vmatprep.subr.bf16.mxu0 0
  %1923 = vmatpush1.bf16.msra.mxu0 0
  %1924 = vmatprep.subr.bf16.mxu0 0
  %1925 = vmatpush1.bf16.msra.mxu0 %v543
  %1926 = vmatprep.subr.bf16.mxu0 0
  %1927 = vmatpush1.bf16.msra.mxu0 %v535
  %1928 = vmatprep.subr.bf16.mxu0 0
  %1929 = vmatpush1.bf16.msra.mxu0 %v534
  %1930 = vmatprep.subr.bf16.mxu0 0
  %1931 = vmatpush2.bf16.msra.mxu0 0
  %1932 = vmatprep.subr.bf16.mxu0 0
  %1933 = vmatpush2.bf16.msra.mxu0 0
  %1934 = vmatprep.subr.bf16.mxu0 0
  %1935 = vmatpush2.bf16.msra.mxu0 0
  %1936 = vmatprep.subr.bf16.mxu0 0
  %1937 = vmatpush2.bf16.msra.mxu0 0
  %1938 = vmatprep.subr.bf16.mxu0 0
  %1939 = vmatpush2.bf16.msra.mxu0 0
  %1940 = vmatprep.subr.bf16.mxu0 0
  %1941 = vmatpush2.bf16.msra.mxu0 0
  %1942 = vmatprep.subr.bf16.mxu0 0
  %1943 = vmatpush2.bf16.msra.mxu0 0
  %1944 = vmatprep.subr.bf16.mxu0 0
  %1945 = vmatpush2.bf16.msra.mxu0 0
  %1946 = vmatprep.mubr.bf16.mxu0 0
  %1947 = vmatmul.mubr.bf16.gmra.mxu0 %v1912
  %v1948 = vpop.f32.mrf.mxu0
  %v1949 = vadd.f32 %v48, %v1948
  %v1950 = vpop.f32.mrf.mxu0
  %v1951 = vpop.f32.mrf.mxu0
  %v1952 = vpop.f32.mrf.mxu0
  %1953 = vdwg.mxu0
  %v1954 = vxor.u32 %v1949, 2147483648
  %v1955 = vmul.f32 %v1954, 1.442695
  %v1956 = vpow.pop %v1955
  %v1957 = vadd.f32 %v1956, 1.0
  %v1958 = vrcp.pop %v1957
  %v1959 = vmul.f32 1.0, %v1958
  %1961 = vrot.lane.b32.xlu0 %v1949, 68
  %v1962 = vpop.permute.xlu0 %1961
  %v1964 = vmul.f32 %v1959, %v1962
  %1966 = vrot.lane.b32.xlu0 %v1964, 40
  %v1967 = vpop.permute.xlu0 %1966
  %v1969 = vadd.f32 %v1949, %v1967
  %v1970 = vtanh.pop %v1969
  %v1971 = vsub.f32 1.0, %v1959
  %1973 = vrot.lane.b32.xlu0 %v1970, 108
  %v1974 = vpop.permute.xlu0 %1973
  %v1976 = vmul.f32 %v1971, %v1974
  %v1977 = vmul.f32 %v1959, %v1904
  %v1978 = vadd.f32 %v1976, %v1977
  %v1980 = vrot.slane %v839, 6
  %v1983 = vrot.slane %v1067, 4
  %v1986 = vrot.slane %v1292, 2
  %v1989 = vrot.slane %v1752, 6
  %v1992 = vrot.slane %v1904, 4
  %v1995 = vrot.slane %v1978, 2
  %v1997 = vsel %vm121, %v609, %v1980
  %v1998 = vsel %vm293, %v1997, %v1983
  %vm1999 = vcmask 1045504
  %v2000 = vsel %vm1999, %v1998, %v1986
  %v2001 = vsel %vm121, %v1522, %v1989
  %v2002 = vsel %vm293, %v2001, %v1992
  %v2003 = vsel %vm1999, %v2002, %v1995
  %v2004 = vpack.c.bf16 %v2003, %v2000
  %v2005 = vlaneseq
  %v2006 = vshrl.u32 %v2005, 7
  %v2007 = vsub.s32 0, %v2006
  %v2008 = vrot.slane %v49, %v2007
  %2010 = vrot.lane.b32.xlu0 %v2004, 108
  %v2011 = vpop.permute.xlu0 %2010
  %v2015 = vunpack.c.l.b16 %v30
  %v2016 = vunpack.c.l.b16 %v31
  %v2017 = vunpack.c.l.b16 %v32
  %v2018 = vpack.c.b16 %v2016, %v2015
  %v2019 = vpack.c.b16 %v2017, %v2017
  %v2022 = vsel %vm117, %v2011, 0
  %v2025 = vsel %vm121, %v2019, 0
  %2027 = vmatprep.subr.bf16.mxu0 0
  %2028 = vmatpush1.bf16.msra.mxu0 0
  %2029 = vmatprep.subr.bf16.mxu0 0
  %2030 = vmatpush1.bf16.msra.mxu0 0
  %2031 = vmatprep.subr.bf16.mxu0 0
  %2032 = vmatpush1.bf16.msra.mxu0 0
  %2033 = vmatprep.subr.bf16.mxu0 0
  %2034 = vmatpush1.bf16.msra.mxu0 0
  %2035 = vmatprep.subr.bf16.mxu0 0
  %2036 = vmatpush1.bf16.msra.mxu0 0
  %2037 = vmatprep.subr.bf16.mxu0 0
  %2038 = vmatpush1.bf16.msra.mxu0 0
  %2039 = vmatprep.subr.bf16.mxu0 0
  %2040 = vmatpush1.bf16.msra.mxu0 %v2025
  %2041 = vmatprep.subr.bf16.mxu0 0
  %2042 = vmatpush1.bf16.msra.mxu0 %v2018
  %2043 = vmatprep.subr.bf16.mxu0 0
  %2044 = vmatpush2.bf16.msra.mxu0 0
  %2045 = vmatprep.subr.bf16.mxu0 0
  %2046 = vmatpush2.bf16.msra.mxu0 0
  %2047 = vmatprep.subr.bf16.mxu0 0
  %2048 = vmatpush2.bf16.msra.mxu0 0
  %2049 = vmatprep.subr.bf16.mxu0 0
  %2050 = vmatpush2.bf16.msra.mxu0 0
  %2051 = vmatprep.subr.bf16.mxu0 0
  %2052 = vmatpush2.bf16.msra.mxu0 0
  %2053 = vmatprep.subr.bf16.mxu0 0
  %2054 = vmatpush2.bf16.msra.mxu0 0
  %2055 = vmatprep.subr.bf16.mxu0 0
  %2056 = vmatpush2.bf16.msra.mxu0 0
  %2057 = vmatprep.subr.bf16.mxu0 0
  %2058 = vmatpush2.bf16.msra.mxu0 0
  %2059 = vmatprep.mubr.bf16.mxu0 0
  %2060 = vmatmul.mubr.bf16.gmra.mxu0 %v2022
  %v2061 = vpop.f32.mrf.mxu0
  %v2062 = vadd.f32 %v2008, %v2061
  %v2063 = vpop.f32.mrf.mxu0
  %v2064 = vpop.f32.mrf.mxu0
  %v2065 = vadd.f32 %v2008, %v2064
  %v2066 = vpop.f32.mrf.mxu0
  %2067 = vdwg.mxu0
  %vm2068 = vcmask 7168
  %2069 = vst.msk [vmem:[%s3] sm:$0xff] %vm2068, %v2062
  %2070 = vst.msk [vmem:[%s3 + $0x8] sm:$0xff] %vm2068, %v2065
  // Predicated region
  $region14: #{gru_forward.1} parent=0 // pred_check
    _
  $region15: #{gru_forward.1} parent=0 // pred_check_branch
    %2072 = sbr.rel (0) target = $region17
  $region16: #{gru_forward.1} parent=0 // pred_region
    _
  $region17: #{gru_forward.1} parent=0 // pred_fallthru
    _
  // Predicated region
  $region18: #{gru_forward.1} parent=0 // pred_check
    _
  $region19: #{gru_forward.1} parent=0 // pred_check_branch
    %2074 = sbr.rel (0) target = $region21
  $region20: #{gru_forward.1} parent=0 // pred_region
    _
  $region21: #{gru_forward.1} parent=0 // pred_fallthru
    _

</llo_original>
